<compile_context>
chip_gen: v6e
topology: v6e:2x2x1
jax: 0.10.0
libtpu: 0.0.40
codegen_flags: <defaults>
</compile_context>

<pallas_src>
import jax
import jax.numpy as jnp
from jax.experimental import pallas as pl
from jax.experimental.pallas import tpu as pltpu

RMS_EPS = 1e-6


def gpt_block_kernel(x_ref, noise_ref, wo_ref, wgu_ref, wdown_ref, out_ref):
    x = x_ref[...]                                   # [tm, E] f32 residual stream

    # ---- attn.o_proj on the random "attention output" (bf16 MXU, f32 acc) ----
    attn_out = jnp.dot(noise_ref[...], wo_ref[...],
                       preferred_element_type=jnp.float32)

    # ---- residual add ----
    h1 = x + attn_out                                # f32

    # ---- post_attention_layernorm (RMSNorm, weight folded into wgu offline) ----
    var = jnp.mean(h1 * h1, axis=-1, keepdims=True)
    h2 = h1 * jax.lax.rsqrt(var + RMS_EPS)           # f32 stats

    # ---- MLP: fused gate/up projection -> SiluAndMul -> down_proj ----
    gu = jnp.dot(h2.astype(jnp.bfloat16), wgu_ref[...],
                 preferred_element_type=jnp.float32)  # [tm, 2*MLP]
    mlp = gu.shape[-1] // 2
    gate = gu[:, :mlp]
    up = gu[:, mlp:]
    act = (gate * jax.nn.sigmoid(gate)) * up          # SiluAndMul, f32 epilogue
    down = jnp.dot(act.astype(jnp.bfloat16), wdown_ref[...],
                   preferred_element_type=jnp.float32)

    # ---- final residual add ----
    out_ref[...] = h1 + down


def gpt_block_pallas(x, noise, wo, wgateup, wdown, *, tm=128):
    T, E = x.shape
    Q = noise.shape[1]
    MLP2 = wgateup.shape[1]
    MLP = wdown.shape[0]
    grid = (T // tm,)
    return pl.pallas_call(
        gpt_block_kernel,
        out_shape=jax.ShapeDtypeStruct((T, E), x.dtype),
        grid_spec=pltpu.PrefetchScalarGridSpec(
            num_scalar_prefetch=0,
            grid=grid,
            in_specs=[
                pl.BlockSpec((tm, E), lambda i: (i, 0)),        # hidden_states tile
                pl.BlockSpec((tm, Q), lambda i: (i, 0)),        # random attn output tile
                pl.BlockSpec((Q, E), lambda i: (0, 0)),         # o_proj weight
                pl.BlockSpec((E, MLP2), lambda i: (0, 0)),      # fused gate/up weight
                pl.BlockSpec((MLP, E), lambda i: (0, 0)),       # down_proj weight
            ],
            out_specs=pl.BlockSpec((tm, E), lambda i: (i, 0)),
        ),
        input_output_aliases={0: 0},                             # residual in == out buffer
        compiler_params=pltpu.CompilerParams(
            dimension_semantics=("parallel",),                   # megacore split on v7x
            vmem_limit_bytes=32 * 1024 * 1024,
        ),
    )(x, noise, wo, wgateup, wdown)


def gpt_block_reference(x, noise, wo, wgateup, wdown):
    # Pure-JAX reference with the same bf16-input / f32-accumulate dot boundaries.
    attn_out = jnp.dot(noise, wo, preferred_element_type=jnp.float32)
    h1 = x + attn_out
    var = jnp.mean(h1 * h1, axis=-1, keepdims=True)
    h2 = h1 * jax.lax.rsqrt(var + RMS_EPS)
    gu = jnp.dot(h2.astype(jnp.bfloat16), wgateup, preferred_element_type=jnp.float32)
    mlp = gu.shape[-1] // 2
    gate, up = gu[:, :mlp], gu[:, mlp:]
    act = jax.nn.silu(gate) * up
    down = jnp.dot(act.astype(jnp.bfloat16), wdown, preferred_element_type=jnp.float32)
    return h1 + down


if __name__ == "__main__":
    # Lane-dense small config consistent with the module.
    T = 256                # num tokens (flattened, vLLM-style)
    E = 128                # embedding_dim
    NQ, NKV = 4, 2         # num_q_heads, num_kv_heads
    D = E // NQ            # head_dim = 32
    Q_SIZE = NQ * D        # 128
    MLP = 256              # mlp_hidden_dim  -> fused gate/up width 2*MLP = 512

    key = jax.random.PRNGKey(0)
    ks = jax.random.split(key, 6)
    init = lambda k, shp: (0.02 * jax.random.normal(k, shp, jnp.float32))

    hidden_states = jax.random.normal(ks[0], (T, E), jnp.float32)
    positions = jnp.arange(T, dtype=jnp.int32)      # unused: RoPE path is dead code

    # weights stored [in, out] so y = x @ W  (== torch.nn.Linear with W.T)
    wo_f32 = init(ks[1], (Q_SIZE, E))
    wgateup_f32 = init(ks[2], (E, 2 * MLP))          # ColumnParallel gated up_proj
    wdown_f32 = init(ks[3], (MLP, E))
    ln2_w = jnp.ones((E,), jnp.float32)              # post_attention_layernorm weight

    # Fold the RMSNorm weight into the fused gate/up weight (exact equivalence),
    # then cast weights to bf16 for the MXU.
    wgateup = (ln2_w[:, None] * wgateup_f32).astype(jnp.bfloat16)
    wo = wo_f32.astype(jnp.bfloat16)
    wdown = wdown_f32.astype(jnp.bfloat16)

    # "attention output" = randn_like(q) per the reference (deterministic stand-in)
    noise = jax.random.normal(ks[4], (T, Q_SIZE), jnp.float32).astype(jnp.bfloat16)

    ref = gpt_block_reference(hidden_states, noise, wo, wgateup, wdown)

    out = jax.jit(gpt_block_pallas)(hidden_states, noise, wo, wgateup, wdown)
    out = jax.block_until_ready(out)

    assert out.shape == (T, E) and out.dtype == jnp.float32
    assert jnp.allclose(out, ref, rtol=1e-2, atol=1e-2)

    print("KERNEL_OK")
</pallas_src>

<mosaic_0001>
module attributes {stable_mosaic.version = 11 : i64} {
  func.func @gpt_block_kernel(%arg0: i32, %arg1: memref<128x128xf32, #tpu.memory_space<vmem>>, %arg2: memref<128x128xbf16, #tpu.memory_space<vmem>>, %arg3: memref<128x128xbf16, #tpu.memory_space<vmem>>, %arg4: memref<128x512xbf16, #tpu.memory_space<vmem>>, %arg5: memref<256x128xbf16, #tpu.memory_space<vmem>>, %arg6: memref<128x128xf32, #tpu.memory_space<vmem>>) attributes {dimension_semantics = [#tpu.dimension_semantics<parallel>], iteration_bounds = array<i64: 2>, scalar_prefetch = 0 : i64, scratch_operands = 0 : i64, tpu.core_type = #tpu.core_type<tc>, window_params = [{transform_indices = @transform_0, window_bounds = array<i64: 128, 128>}, {transform_indices = @transform_1, window_bounds = array<i64: 128, 128>}, {pipeline_mode = #tpu.pipeline_mode<synchronous>, transform_indices = @transform_2, window_bounds = array<i64: 128, 128>}, {pipeline_mode = #tpu.pipeline_mode<synchronous>, transform_indices = @transform_3, window_bounds = array<i64: 128, 512>}, {pipeline_mode = #tpu.pipeline_mode<synchronous>, transform_indices = @transform_4, window_bounds = array<i64: 256, 128>}, {transform_indices = @transform_5, window_bounds = array<i64: 128, 128>}]} {
    %c0 = arith.constant 0 : index
    %c0_0 = arith.constant 0 : index
    %0 = vector.load %arg1[%c0, %c0_0] : memref<128x128xf32, #tpu.memory_space<vmem>>, vector<128x128xf32>
    %c0_1 = arith.constant 0 : index
    %c0_2 = arith.constant 0 : index
    %1 = vector.load %arg2[%c0_1, %c0_2] : memref<128x128xbf16, #tpu.memory_space<vmem>>, vector<128x128xbf16>
    %c0_3 = arith.constant 0 : index
    %c0_4 = arith.constant 0 : index
    %2 = vector.load %arg3[%c0_3, %c0_4] : memref<128x128xbf16, #tpu.memory_space<vmem>>, vector<128x128xbf16>
    %cst = arith.constant dense<0.000000e+00> : vector<128x128xf32>
    %3 = tpu.matmul %1, %2, %cst {dimension_numbers = #tpu.dot_dimension_numbers<[1], [0], [0], [1], [0, 0, 1, 1], [], []>} : vector<128x128xbf16>, vector<128x128xbf16>, vector<128x128xf32> -> vector<128x128xf32>
    %4 = arith.addf %0, %3 : vector<128x128xf32>
    %5 = arith.mulf %4, %4 : vector<128x128xf32>
    %cst_5 = arith.constant dense<0.000000e+00> : vector<128xf32>
    %6 = vector.multi_reduction <add>, %5, %cst_5 [1] : vector<128x128xf32> to vector<128xf32>
    %7 = vector.shape_cast %6 : vector<128xf32> to vector<128x1xf32>
    %cst_6 = arith.constant 1.280000e+02 : f32
    %8 = vector.broadcast %cst_6 : f32 to vector<128x1xf32>
    %9 = arith.divf %7, %8 : vector<128x1xf32>
    %cst_7 = arith.constant 9.99999997E-7 : f32
    %10 = vector.broadcast %cst_7 : f32 to vector<128x1xf32>
    %11 = arith.addf %9, %10 : vector<128x1xf32>
    %12 = math.rsqrt %11 : vector<128x1xf32>
    %13 = vector.broadcast %12 : vector<128x1xf32> to vector<128x128xf32>
    %14 = arith.mulf %4, %13 : vector<128x128xf32>
    %15 = arith.truncf %14 : vector<128x128xf32> to vector<128x128xbf16>
    %c0_8 = arith.constant 0 : index
    %c0_9 = arith.constant 0 : index
    %16 = vector.load %arg4[%c0_8, %c0_9] : memref<128x512xbf16, #tpu.memory_space<vmem>>, vector<128x512xbf16>
    %cst_10 = arith.constant dense<0.000000e+00> : vector<128x512xf32>
    %17 = tpu.matmul %15, %16, %cst_10 {dimension_numbers = #tpu.dot_dimension_numbers<[1], [0], [0], [1], [0, 0, 1, 1], [], []>} : vector<128x128xbf16>, vector<128x512xbf16>, vector<128x512xf32> -> vector<128x512xf32>
    %18 = vector.extract_strided_slice %17 {offsets = [0, 0], sizes = [128, 256], strides = [1, 1]} : vector<128x512xf32> to vector<128x256xf32>
    %19 = vector.extract_strided_slice %17 {offsets = [0, 256], sizes = [128, 256], strides = [1, 1]} : vector<128x512xf32> to vector<128x256xf32>
    %20 = arith.negf %18 : vector<128x256xf32>
    %21 = math.exp %20 : vector<128x256xf32>
    %cst_11 = arith.constant 1.000000e+00 : f32
    %22 = vector.broadcast %cst_11 : f32 to vector<128x256xf32>
    %23 = arith.addf %22, %21 : vector<128x256xf32>
    %24 = arith.divf %22, %23 : vector<128x256xf32>
    %25 = arith.mulf %18, %24 : vector<128x256xf32>
    %26 = arith.mulf %25, %19 : vector<128x256xf32>
    %27 = arith.truncf %26 : vector<128x256xf32> to vector<128x256xbf16>
    %c0_12 = arith.constant 0 : index
    %c0_13 = arith.constant 0 : index
    %28 = vector.load %arg5[%c0_12, %c0_13] : memref<256x128xbf16, #tpu.memory_space<vmem>>, vector<256x128xbf16>
    %cst_14 = arith.constant dense<0.000000e+00> : vector<128x128xf32>
    %29 = tpu.matmul %27, %28, %cst_14 {dimension_numbers = #tpu.dot_dimension_numbers<[1], [0], [0], [1], [0, 0, 1, 1], [], []>} : vector<128x256xbf16>, vector<256x128xbf16>, vector<128x128xf32> -> vector<128x128xf32>
    %30 = arith.addf %4, %29 : vector<128x128xf32>
    %c0_15 = arith.constant 0 : index
    %c0_16 = arith.constant 0 : index
    %31 = vector.load %arg6[%c0_15, %c0_16] : memref<128x128xf32, #tpu.memory_space<vmem>>, vector<128x128xf32>
    tpu.vector_store %arg6[%c0_15, %c0_16], %30 {strides = array<i32>} : memref<128x128xf32, #tpu.memory_space<vmem>>, vector<128x128xf32>,
    return
  }
  func.func @transform_0(%arg0: i32) -> (i32, i32) {
    %c0_i32 = arith.constant 0 : i32
    %c0_i32_0 = arith.constant 0 : i32
    return %arg0, %c0_i32 : i32, i32
  }
  func.func @transform_1(%arg0: i32) -> (i32, i32) {
    %c0_i32 = arith.constant 0 : i32
    %c0_i32_0 = arith.constant 0 : i32
    return %arg0, %c0_i32 : i32, i32
  }
  func.func @transform_2(%arg0: i32) -> (i32, i32) {
    %c0_i32 = arith.constant 0 : i32
    %c0_i32_0 = arith.constant 0 : i32
    %c0_i32_1 = arith.constant 0 : i32
    return %c0_i32, %c0_i32_0 : i32, i32
  }
  func.func @transform_3(%arg0: i32) -> (i32, i32) {
    %c0_i32 = arith.constant 0 : i32
    %c0_i32_0 = arith.constant 0 : i32
    %c0_i32_1 = arith.constant 0 : i32
    return %c0_i32, %c0_i32_0 : i32, i32
  }
  func.func @transform_4(%arg0: i32) -> (i32, i32) {
    %c0_i32 = arith.constant 0 : i32
    %c0_i32_0 = arith.constant 0 : i32
    %c0_i32_1 = arith.constant 0 : i32
    return %c0_i32, %c0_i32_0 : i32, i32
  }
  func.func @transform_5(%arg0: i32) -> (i32, i32) {
    %c0_i32 = arith.constant 0 : i32
    %c0_i32_0 = arith.constant 0 : i32
    return %arg0, %c0_i32 : i32, i32
  }
}

</mosaic_0001>

<llo_original>
// kernel: gpt_block_pallas.1
$region0: #{gpt_block_pallas.1}
  #allocation0 [shape = 'u32[]', space=smem, size = 0x4, offset = 0x4, fixed_abs, tag = 'smem constant byte address 0x4 - core index']
  #allocation1 [shape = 'u32[144,128]{1,0:T(1,128)}', space=vmem, size = 0x12000, scoped, tag = 'internal scratch']
  %s0 = inlined_call_operand.hbm [shape: f32[256,128], index: 0, kind: input, shape index: {}, may-alias: {0,5}]
  %s1 = inlined_call_operand.vmem [shape: bf16[256,128], index: 1, kind: input, shape index: {}]
  %s2 = inlined_call_operand.hbm [shape: bf16[128,128], index: 2, kind: input, shape index: {}]
  %s3 = inlined_call_operand.vmem [shape: bf16[128,512], index: 3, kind: input, shape index: {}]
  %s4 = inlined_call_operand.vmem [shape: bf16[256,128], index: 4, kind: input, shape index: {}]
  %s5 = inlined_call_operand.hbm [shape: f32[256,128], index: 5, kind: output, shape index: {}, may-alias: {0,5}]
  %s6 = sld [smem:[#allocation0]]
  $region61: #{gpt_block_pallas.1} parent=0
    _
  %s8 = ssub.s32 1, %s6
  %s9 = scalar_select 0, %s8, %s6
  $region1: #{gpt_block_pallas.1} parent=0
    #allocation2 [shape = 'u8[131072]{0}', space=vmem, size = 0x20000, scoped, tag = 'input window, operand 0']
    #allocation3 [shape = 's32[2]{0}', space=sflag, size = 0x8, scoped, tag = 'scoped memory for gpt_block_pallas.1']
    #allocation4 [shape = 's32[2]{0}', space=sflag, size = 0x8, scoped, tag = 'scoped memory for gpt_block_pallas.1']
    #allocation5 [shape = 'u8[32768]{0}', space=vmem, size = 0x8000, scoped, tag = 'input window, operand 2, single buffered']
    #allocation6 [shape = 's32[1]{0}', space=sflag, size = 0x4, scoped, tag = 'scoped memory for gpt_block_pallas.1']
    #allocation7 [shape = 'u8[131072]{0}', space=vmem, size = 0x20000, scoped, tag = 'output window, operand 0']
    %10 = vsyncpa [#allocation3], 0
    %s11 = scalar_lea.sflag [#allocation3], 1
    %12 = vsyncpa %s11, 0
    %13 = vsyncpa [#allocation6], 0
    %14 = vsyncpa [#allocation4], 0
    %s15 = scalar_lea.sflag [#allocation4], 1
    %16 = vsyncpa %s15, 0
    loop: start=0, step=1, limit=4
    $region2: #{gpt_block_pallas.1} parent=1 // loop_pre_header
      _
    $region3: #{gpt_block_pallas.1} parent=1 // loop_header
      %s18 = sphi 0, %s22
      %p19 = scmp.ge.s32.totalorder %s18, 4
      %s28 = sphi 0, %s30
      %s31 = sphi 0, %s28
      %s32 = sphi 0, %s31
      %s48 = sphi 0, %s32
      %s54 = sphi 0, %s56
      %s57 = sphi 0, %s54
      %s58 = sphi 0, %s57
      %s74 = sphi 0, %s58
      %s78 = sphi 0, %s78
      %s80 = sphi 0, %s78
      %s81 = sphi 0, %s80
      %s95 = sphi 0, %s81
      %s99 = sphi 0, %s99
      %s101 = sphi 0, %s99
      %s102 = sphi 0, %s101
      %s116 = sphi 0, %s102
      %s120 = sphi 0, %s120
      %s122 = sphi 0, %s120
      %s123 = sphi 0, %s122
      %s137 = sphi 0, %s123
      %s143 = sphi 0, %s145
      %s146 = sphi 0, %s143
      %s147 = sphi 0, %s146
      %s163 = sphi 0, %s147
    $region4: #{gpt_block_pallas.1} parent=1 // loop_header_branch
      %21 = sbr.rel (%p19) target = $region8
    $region5: #{gpt_block_pallas.1} parent=1 // loop_body
      %s23 = ssub.s32 %s18, 1
      %s24 = ssub.s32 %s18, 2
      %s25 = sadd.s32 %s18, 1
      %s26 = ssub.s32 %s18, %s25
      %p27 = scmp.eq.s32.totalorder %s26, 0
      %s29 = sadd.s32 %s28, 1
      %s30 = scalar_select %p27, %s28, %s29
      %p33 = pneg %p27
      %p34 = scmp.eq.s32.totalorder %s18, 1
      %p35 = por %p33, %p34
      %p36 = scmp.ne.s32.totalorder %s28, %s31
      %p37 = scmp.eq.s32.totalorder %s18, 0
      %p38 = por %p36, %p37
      %p39 = scmp.ne.s32.totalorder %s28, %s31
      %p40 = scmp.eq.s32.totalorder %s23, 1
      %p41 = por %p39, %p40
      %p42 = scmp.ne.s32.totalorder %s31, %s32
      %p43 = scmp.eq.s32.totalorder %s23, 0
      %p44 = por %p42, %p43
      %p45 = scmp.ne.s32.totalorder %s31, %s32
      %p46 = scmp.eq.s32.totalorder %s24, 1
      %p47 = por %p45, %p46
      %p49 = scmp.ne.s32.totalorder %s32, %s48
      %p50 = scmp.eq.s32.totalorder %s24, 0
      %p51 = por %p49, %p50
      %s52 = ssub.s32 %s18, %s25
      %p53 = scmp.eq.s32.totalorder %s52, 0
      %s55 = sadd.s32 %s54, 1
      %s56 = scalar_select %p53, %s54, %s55
      %p59 = pneg %p53
      %p60 = scmp.eq.s32.totalorder %s18, 1
      %p61 = por %p59, %p60
      %p62 = scmp.ne.s32.totalorder %s54, %s57
      %p63 = scmp.eq.s32.totalorder %s18, 0
      %p64 = por %p62, %p63
      %p65 = scmp.ne.s32.totalorder %s54, %s57
      %p66 = scmp.eq.s32.totalorder %s23, 1
      %p67 = por %p65, %p66
      %p68 = scmp.ne.s32.totalorder %s57, %s58
      %p69 = scmp.eq.s32.totalorder %s23, 0
      %p70 = por %p68, %p69
      %p71 = scmp.ne.s32.totalorder %s57, %s58
      %p72 = scmp.eq.s32.totalorder %s24, 1
      %p73 = por %p71, %p72
      %p75 = scmp.ne.s32.totalorder %s58, %s74
      %p76 = scmp.eq.s32.totalorder %s24, 0
      %p77 = por %p75, %p76
      %s79 = sadd.s32 %s78, 1
      %p82 = scmp.eq.s32.totalorder %s18, 1
      %p83 = scmp.ne.s32.totalorder %s78, %s80
      %p84 = scmp.eq.s32.totalorder %s18, 0
      %p85 = por %p83, %p84
      %p86 = scmp.ne.s32.totalorder %s78, %s80
      %p87 = scmp.eq.s32.totalorder %s23, 1
      %p88 = por %p86, %p87
      %p89 = scmp.ne.s32.totalorder %s80, %s81
      %p90 = scmp.eq.s32.totalorder %s23, 0
      %p91 = por %p89, %p90
      %p92 = scmp.ne.s32.totalorder %s80, %s81
      %p93 = scmp.eq.s32.totalorder %s24, 1
      %p94 = por %p92, %p93
      %p96 = scmp.ne.s32.totalorder %s81, %s95
      %p97 = scmp.eq.s32.totalorder %s24, 0
      %p98 = por %p96, %p97
      %s100 = sadd.s32 %s99, 1
      %p103 = scmp.eq.s32.totalorder %s18, 1
      %p104 = scmp.ne.s32.totalorder %s99, %s101
      %p105 = scmp.eq.s32.totalorder %s18, 0
      %p106 = por %p104, %p105
      %p107 = scmp.ne.s32.totalorder %s99, %s101
      %p108 = scmp.eq.s32.totalorder %s23, 1
      %p109 = por %p107, %p108
      %p110 = scmp.ne.s32.totalorder %s101, %s102
      %p111 = scmp.eq.s32.totalorder %s23, 0
      %p112 = por %p110, %p111
      %p113 = scmp.ne.s32.totalorder %s101, %s102
      %p114 = scmp.eq.s32.totalorder %s24, 1
      %p115 = por %p113, %p114
      %p117 = scmp.ne.s32.totalorder %s102, %s116
      %p118 = scmp.eq.s32.totalorder %s24, 0
      %p119 = por %p117, %p118
      %s121 = sadd.s32 %s120, 1
      %p124 = scmp.eq.s32.totalorder %s18, 1
      %p125 = scmp.ne.s32.totalorder %s120, %s122
      %p126 = scmp.eq.s32.totalorder %s18, 0
      %p127 = por %p125, %p126
      %p128 = scmp.ne.s32.totalorder %s120, %s122
      %p129 = scmp.eq.s32.totalorder %s23, 1
      %p130 = por %p128, %p129
      %p131 = scmp.ne.s32.totalorder %s122, %s123
      %p132 = scmp.eq.s32.totalorder %s23, 0
      %p133 = por %p131, %p132
      %p134 = scmp.ne.s32.totalorder %s122, %s123
      %p135 = scmp.eq.s32.totalorder %s24, 1
      %p136 = por %p134, %p135
      %p138 = scmp.ne.s32.totalorder %s123, %s137
      %p139 = scmp.eq.s32.totalorder %s24, 0
      %p140 = por %p138, %p139
      %s141 = ssub.s32 %s18, %s25
      %p142 = scmp.eq.s32.totalorder %s141, 0
      %s144 = sadd.s32 %s143, 1
      %s145 = scalar_select %p142, %s143, %s144
      %p148 = pneg %p142
      %p149 = scmp.eq.s32.totalorder %s18, 1
      %p150 = por %p148, %p149
      %p151 = scmp.ne.s32.totalorder %s143, %s146
      %p152 = scmp.eq.s32.totalorder %s18, 0
      %p153 = por %p151, %p152
      %p154 = scmp.ne.s32.totalorder %s143, %s146
      %p155 = scmp.eq.s32.totalorder %s23, 1
      %p156 = por %p154, %p155
      %p157 = scmp.ne.s32.totalorder %s146, %s147
      %p158 = scmp.eq.s32.totalorder %s23, 0
      %p159 = por %p157, %p158
      %p160 = scmp.ne.s32.totalorder %s146, %s147
      %p161 = scmp.eq.s32.totalorder %s24, 1
      %p162 = por %p160, %p161
      %p164 = scmp.ne.s32.totalorder %s147, %s163
      %p165 = scmp.eq.s32.totalorder %s24, 0
      %p166 = por %p164, %p165
      %p167 = scmp.le.s32.totalorder 1, %s18
      %p168 = scmp.lt.s32.totalorder %s18, 3
      %p169 = pnand %p167, %p168
      %p170 = pneg %p169
      // Predicated region
      $region9: #{gpt_block_pallas.1} parent=5 // pred_check
        _
      $region10: #{gpt_block_pallas.1} parent=5 // pred_check_branch
        %172 = sbr.rel (%p169) target = $region12
      $region11: #{gpt_block_pallas.1} parent=5 // pred_region
        %s173 = ssub.s32 %s18, 1
        // Predicated region
        $region13: #{gpt_block_pallas.1} parent=11 // pred_check
          %p174 = pneg %p91
        $region14: #{gpt_block_pallas.1} parent=11 // pred_check_branch
          %176 = sbr.rel (%p174) target = $region16
        $region15: #{gpt_block_pallas.1} parent=11 // pred_region
          %s178 = ssub.s32 1024, 1024
          %179 = vsyncadd [#allocation6], %s178
          %s180 = sshll.u32 [#allocation5], 4
          %s181 = int_to_ptr.vmem [resolvable:$true] %s180
          %186 = dma.hbm_to_vmem [thread:$0]  %s2, 1024, %s181, [#allocation6], 64, 64, 4
        $region16: #{gpt_block_pallas.1} parent=11 // pred_fallthru
          _
        // Predicated region
        $region17: #{gpt_block_pallas.1} parent=11 // pred_check
          %p187 = pneg %p112
        $region18: #{gpt_block_pallas.1} parent=11 // pred_check_branch
          %189 = sbr.rel (%p187) target = $region20
        $region19: #{gpt_block_pallas.1} parent=11 // pred_region
          _
        $region20: #{gpt_block_pallas.1} parent=11 // pred_fallthru
          _
        // Predicated region
        $region21: #{gpt_block_pallas.1} parent=11 // pred_check
          %p190 = pneg %p133
        $region22: #{gpt_block_pallas.1} parent=11 // pred_check_branch
          %192 = sbr.rel (%p190) target = $region24
        $region23: #{gpt_block_pallas.1} parent=11 // pred_region
          _
        $region24: #{gpt_block_pallas.1} parent=11 // pred_fallthru
          _
      $region12: #{gpt_block_pallas.1} parent=5 // pred_fallthru
        _
      %p193 = scmp.lt.s32.totalorder %s18, 2
      // Predicated region
      $region25: #{gpt_block_pallas.1} parent=5 // pred_check
        %p194 = pneg %p193
      $region26: #{gpt_block_pallas.1} parent=5 // pred_check_branch
        %196 = sbr.rel (%p194) target = $region28
      $region27: #{gpt_block_pallas.1} parent=5 // pred_region
        // Predicated region
        $region29: #{gpt_block_pallas.1} parent=27 // pred_check
          %p197 = pneg %p38
        $region30: #{gpt_block_pallas.1} parent=27 // pred_check_branch
          %199 = sbr.rel (%p197) target = $region32
        $region31: #{gpt_block_pallas.1} parent=27 // pred_region
          %s200 = sand.u32 %s28, 1
          %s201 = scalar_lea.sflag [#allocation3], %s200
          %s202 = sand.u32 %s28, 1
          %s203 = smul.addr %s202, 128
          %s204 = scalar_lea.vmem [#allocation2], %s203
          %s205 = smul.u32 16, %s18
          %s207 = ssub.s32 2048, 2048
          %208 = vsyncadd %s201, %s207
          %s209 = smul.addr %s205, 128
          %s210 = scalar_lea.hbm %s0, %s209
          %s211 = sshll.u32 %s204, 4
          %s212 = int_to_ptr.vmem [resolvable:$true] %s211
          %217 = dma.hbm_to_vmem [thread:$0]  %s210, 2048, %s212, %s201, 128, 128, 8
        $region32: #{gpt_block_pallas.1} parent=27 // pred_fallthru
          _
        // Predicated region
        $region33: #{gpt_block_pallas.1} parent=27 // pred_check
          %p218 = pneg %p64
        $region34: #{gpt_block_pallas.1} parent=27 // pred_check_branch
          %220 = sbr.rel (%p218) target = $region36
        $region35: #{gpt_block_pallas.1} parent=27 // pred_region
          %s221 = smul.u32 16, %s18
          %p222 = scmp.lt.s32.totalorder %s221, 31
          %s223 = scalar_select %p222, %s221, 31
          %s224 = smul.addr %s223, 4
          %s225 = scalar_lea.vmem %s1, %s224
          %s226 = smul.u32 16, %s18
        $region36: #{gpt_block_pallas.1} parent=27 // pred_fallthru
          _
      $region28: #{gpt_block_pallas.1} parent=5 // pred_fallthru
        _
      %p227 = scmp.le.s32.totalorder 1, %s18
      %p228 = scmp.lt.s32.totalorder %s18, 3
      %p229 = pnand %p227, %p228
      %p230 = pneg %p229
      // Predicated region
      $region37: #{gpt_block_pallas.1} parent=5 // pred_check
        _
      $region38: #{gpt_block_pallas.1} parent=5 // pred_check_branch
        %232 = sbr.rel (%p229) target = $region40
      $region39: #{gpt_block_pallas.1} parent=5 // pred_region
        %s233 = ssub.s32 %s18, 1
        %s234 = sand.u32 %s31, 1
        %s235 = scalar_lea.sflag [#allocation3], %s234
        %s236 = sand.u32 %s31, 1
        %s237 = smul.addr %s236, 128
        %s238 = scalar_lea.vmem [#allocation2], %s237
        // Predicated region
        $region41: #{gpt_block_pallas.1} parent=39 // pred_check
          %p239 = pneg %p44
        $region42: #{gpt_block_pallas.1} parent=39 // pred_check_branch
          %241 = sbr.rel (%p239) target = $region44
        $region43: #{gpt_block_pallas.1} parent=39 // pred_region
          %242 = dma.done %s235, 2048
        $region44: #{gpt_block_pallas.1} parent=39 // pred_fallthru
          _
        // Predicated region
        $region45: #{gpt_block_pallas.1} parent=39 // pred_check
          %p243 = pneg %p91
        $region46: #{gpt_block_pallas.1} parent=39 // pred_check_branch
          %245 = sbr.rel (%p243) target = $region48
        $region47: #{gpt_block_pallas.1} parent=39 // pred_region
          %246 = dma.done [#allocation6], 1024
        $region48: #{gpt_block_pallas.1} parent=39 // pred_fallthru
          _
        %s247 = sand.u32 %s31, 1
        %s248 = scalar_lea.sflag [#allocation3], %s247
        %s249 = sand.u32 %s31, 1
        %s250 = smul.addr %s249, 128
        %s251 = scalar_lea.vmem [#allocation2], %s250
        %p252 = pneg %p44
        %p253 = pneg %p41
        %s254 = smul.u32 16, %s23
        %p255 = scmp.lt.s32.totalorder %s254, 31
        %s256 = scalar_select %p255, %s254, 31
        %s257 = smul.addr %s256, 4
        %s258 = scalar_lea.vmem %s1, %s257
        %p259 = pneg %p70
        %p260 = pneg %p67
        %p261 = pneg %p91
        %p262 = pneg %p88
        %p263 = pneg %p112
        %p264 = pneg %p109
        %p265 = pneg %p133
        %p266 = pneg %p130
        %p267 = pneg %p159
        %p268 = pneg %p156
        %s269 = sand.u32 %s146, 1
        %s270 = scalar_lea.sflag [#allocation4], %s269
        %s271 = sand.u32 %s146, 1
        %s272 = smul.addr %s271, 128
        %s273 = scalar_lea.vmem [#allocation7], %s272
        %s274 = smul.u32 16, %s23
        %s275 = smul.u32 16, %s23
        %p276 = scmp.lt.s32.totalorder %s275, 31
        %s277 = scalar_select %p276, %s275, 31
        %s278 = smul.addr %s277, 4
        %s279 = scalar_lea.vmem %s1, %s278
        %s280 = smul.u32 16, %s23
        %s281 = smul.u32 16, %s23
        %v283 = vld [vmem:[%s238] sm:$0xff]
        %v284 = vld [vmem:[%s238 + $0x8] sm:$0xff]
        %v285 = vld [vmem:[%s238 + $0x10] sm:$0xff]
        %v286 = vld [vmem:[%s238 + $0x18] sm:$0xff]
        %v287 = vld [vmem:[%s238 + $0x20] sm:$0xff]
        %v288 = vld [vmem:[%s238 + $0x28] sm:$0xff]
        %v289 = vld [vmem:[%s238 + $0x30] sm:$0xff]
        %v290 = vld [vmem:[%s238 + $0x38] sm:$0xff]
        %v291 = vld [vmem:[%s238 + $0x40] sm:$0xff]
        %v292 = vld [vmem:[%s238 + $0x48] sm:$0xff]
        %v293 = vld [vmem:[%s238 + $0x50] sm:$0xff]
        %v294 = vld [vmem:[%s238 + $0x58] sm:$0xff]
        %v295 = vld [vmem:[%s238 + $0x60] sm:$0xff]
        %v296 = vld [vmem:[%s238 + $0x68] sm:$0xff]
        %v297 = vld [vmem:[%s238 + $0x70] sm:$0xff]
        %v298 = vld [vmem:[%s238 + $0x78] sm:$0xff]
        %v299 = vld [vmem:[%s279] sm:$0xf]
        %v300 = vld [vmem:[%s279 + $0x4] sm:$0xf]
        %v301 = vld [vmem:[%s279 + $0x8] sm:$0xf]
        %v302 = vld [vmem:[%s279 + $0xc] sm:$0xf]
        %v303 = vld [vmem:[%s279 + $0x10] sm:$0xf]
        %v304 = vld [vmem:[%s279 + $0x14] sm:$0xf]
        %v305 = vld [vmem:[%s279 + $0x18] sm:$0xf]
        %v306 = vld [vmem:[%s279 + $0x1c] sm:$0xf]
        %v307 = vld [vmem:[%s279 + $0x20] sm:$0xf]
        %v308 = vld [vmem:[%s279 + $0x24] sm:$0xf]
        %v309 = vld [vmem:[%s279 + $0x28] sm:$0xf]
        %v310 = vld [vmem:[%s279 + $0x2c] sm:$0xf]
        %v311 = vld [vmem:[%s279 + $0x30] sm:$0xf]
        %v312 = vld [vmem:[%s279 + $0x34] sm:$0xf]
        %v313 = vld [vmem:[%s279 + $0x38] sm:$0xf]
        %v314 = vld [vmem:[%s279 + $0x3c] sm:$0xf]
        %v315 = vld [vmem:[#allocation5] sm:$0xf]
        %v316 = vld [vmem:[#allocation5 + $0x4] sm:$0xf]
        %v317 = vld [vmem:[#allocation5 + $0x8] sm:$0xf]
        %v318 = vld [vmem:[#allocation5 + $0xc] sm:$0xf]
        %v319 = vld [vmem:[#allocation5 + $0x10] sm:$0xf]
        %v320 = vld [vmem:[#allocation5 + $0x14] sm:$0xf]
        %v321 = vld [vmem:[#allocation5 + $0x18] sm:$0xf]
        %v322 = vld [vmem:[#allocation5 + $0x1c] sm:$0xf]
        %v323 = vld [vmem:[#allocation5 + $0x20] sm:$0xf]
        %v324 = vld [vmem:[#allocation5 + $0x24] sm:$0xf]
        %v325 = vld [vmem:[#allocation5 + $0x28] sm:$0xf]
        %v326 = vld [vmem:[#allocation5 + $0x2c] sm:$0xf]
        %v327 = vld [vmem:[#allocation5 + $0x30] sm:$0xf]
        %v328 = vld [vmem:[#allocation5 + $0x34] sm:$0xf]
        %v329 = vld [vmem:[#allocation5 + $0x38] sm:$0xf]
        %v330 = vld [vmem:[#allocation5 + $0x3c] sm:$0xf]
        %v347 = vunpack.c.l.b16 %v299
        %v348 = vunpack.c.l.b16 %v300
        %v349 = vunpack.c.l.b16 %v301
        %v350 = vunpack.c.l.b16 %v302
        %v351 = vunpack.c.l.b16 %v303
        %v352 = vunpack.c.l.b16 %v304
        %v353 = vunpack.c.l.b16 %v305
        %v354 = vunpack.c.l.b16 %v306
        %v355 = vunpack.c.l.b16 %v307
        %v356 = vunpack.c.l.b16 %v308
        %v357 = vunpack.c.l.b16 %v309
        %v358 = vunpack.c.l.b16 %v310
        %v359 = vunpack.c.l.b16 %v311
        %v360 = vunpack.c.l.b16 %v312
        %v361 = vunpack.c.l.b16 %v313
        %v362 = vunpack.c.l.b16 %v314
        %v363 = vpack.c.b16 %v348, %v347
        %v364 = vpack.c.b16 %v350, %v349
        %v365 = vpack.c.b16 %v352, %v351
        %v366 = vpack.c.b16 %v354, %v353
        %v367 = vpack.c.b16 %v356, %v355
        %v368 = vpack.c.b16 %v358, %v357
        %v369 = vpack.c.b16 %v360, %v359
        %v370 = vpack.c.b16 %v362, %v361
        %v395 = vunpack.c.l.b16 %v315
        %v396 = vunpack.c.l.b16 %v316
        %v397 = vunpack.c.l.b16 %v317
        %v398 = vunpack.c.l.b16 %v318
        %v399 = vunpack.c.l.b16 %v319
        %v400 = vunpack.c.l.b16 %v320
        %v401 = vunpack.c.l.b16 %v321
        %v402 = vunpack.c.l.b16 %v322
        %v403 = vunpack.c.l.b16 %v323
        %v404 = vunpack.c.l.b16 %v324
        %v405 = vunpack.c.l.b16 %v325
        %v406 = vunpack.c.l.b16 %v326
        %v407 = vunpack.c.l.b16 %v327
        %v408 = vunpack.c.l.b16 %v328
        %v409 = vunpack.c.l.b16 %v329
        %v410 = vunpack.c.l.b16 %v330
        %v411 = vpack.c.b16 %v396, %v395
        %v412 = vpack.c.b16 %v398, %v397
        %v413 = vpack.c.b16 %v400, %v399
        %v414 = vpack.c.b16 %v402, %v401
        %v415 = vpack.c.b16 %v404, %v403
        %v416 = vpack.c.b16 %v406, %v405
        %v417 = vpack.c.b16 %v408, %v407
        %v418 = vpack.c.b16 %v410, %v409
        %427 = vmatprep.subr.bf16.mxu0 0
        %428 = vmatpush1.bf16.msra.mxu0 %v418
        %429 = vmatprep.subr.bf16.mxu0 0
        %430 = vmatpush1.bf16.msra.mxu0 %v417
        %431 = vmatprep.subr.bf16.mxu0 0
        %432 = vmatpush1.bf16.msra.mxu0 %v416
        %433 = vmatprep.subr.bf16.mxu0 0
        %434 = vmatpush1.bf16.msra.mxu0 %v415
        %435 = vmatprep.subr.bf16.mxu0 0
        %436 = vmatpush1.bf16.msra.mxu0 %v414
        %437 = vmatprep.subr.bf16.mxu0 0
        %438 = vmatpush1.bf16.msra.mxu0 %v413
        %439 = vmatprep.subr.bf16.mxu0 0
        %440 = vmatpush1.bf16.msra.mxu0 %v412
        %441 = vmatprep.subr.bf16.mxu0 0
        %442 = vmatpush1.bf16.msra.mxu0 %v411
        %443 = vmatprep.subr.bf16.mxu0 0
        %444 = vmatpush2.bf16.msra.mxu0 0
        %445 = vmatprep.subr.bf16.mxu0 0
        %446 = vmatpush2.bf16.msra.mxu0 0
        %447 = vmatprep.subr.bf16.mxu0 0
        %448 = vmatpush2.bf16.msra.mxu0 0
        %449 = vmatprep.subr.bf16.mxu0 0
        %450 = vmatpush2.bf16.msra.mxu0 0
        %451 = vmatprep.subr.bf16.mxu0 0
        %452 = vmatpush2.bf16.msra.mxu0 0
        %453 = vmatprep.subr.bf16.mxu0 0
        %454 = vmatpush2.bf16.msra.mxu0 0
        %455 = vmatprep.subr.bf16.mxu0 0
        %456 = vmatpush2.bf16.msra.mxu0 0
        %457 = vmatprep.subr.bf16.mxu0 0
        %458 = vmatpush2.bf16.msra.mxu0 0
        %459 = vmatprep.mubr.bf16.mxu0 0
        %460 = vmatmul.mubr.bf16.gmra.mxu0 %v363
        %v461 = vpop.f32.mrf.mxu0
        %v462 = vadd.f32 0.0, %v461
        %v463 = vpop.f32.mrf.mxu0
        %v464 = vpop.f32.mrf.mxu0
        %v465 = vadd.f32 0.0, %v464
        %v466 = vpop.f32.mrf.mxu0
        %467 = vmatprep.mubr.bf16.mxu0 0
        %468 = vmatmul.mubr.bf16.gmra.mxu0 %v364
        %v469 = vpop.f32.mrf.mxu0
        %v470 = vadd.f32 0.0, %v469
        %v471 = vpop.f32.mrf.mxu0
        %v472 = vpop.f32.mrf.mxu0
        %v473 = vadd.f32 0.0, %v472
        %v474 = vpop.f32.mrf.mxu0
        %475 = vmatprep.mubr.bf16.mxu0 0
        %476 = vmatmul.mubr.bf16.gmra.mxu0 %v365
        %v477 = vpop.f32.mrf.mxu0
        %v478 = vadd.f32 0.0, %v477
        %v479 = vpop.f32.mrf.mxu0
        %v480 = vpop.f32.mrf.mxu0
        %v481 = vadd.f32 0.0, %v480
        %v482 = vpop.f32.mrf.mxu0
        %483 = vmatprep.mubr.bf16.mxu0 0
        %484 = vmatmul.mubr.bf16.gmra.mxu0 %v366
        %v485 = vpop.f32.mrf.mxu0
        %v486 = vadd.f32 0.0, %v485
        %v487 = vpop.f32.mrf.mxu0
        %v488 = vpop.f32.mrf.mxu0
        %v489 = vadd.f32 0.0, %v488
        %v490 = vpop.f32.mrf.mxu0
        %491 = vmatprep.mubr.bf16.mxu0 0
        %492 = vmatmul.mubr.bf16.gmra.mxu0 %v367
        %v493 = vpop.f32.mrf.mxu0
        %v494 = vadd.f32 0.0, %v493
        %v495 = vpop.f32.mrf.mxu0
        %v496 = vpop.f32.mrf.mxu0
        %v497 = vadd.f32 0.0, %v496
        %v498 = vpop.f32.mrf.mxu0
        %499 = vmatprep.mubr.bf16.mxu0 0
        %500 = vmatmul.mubr.bf16.gmra.mxu0 %v368
        %v501 = vpop.f32.mrf.mxu0
        %v502 = vadd.f32 0.0, %v501
        %v503 = vpop.f32.mrf.mxu0
        %v504 = vpop.f32.mrf.mxu0
        %v505 = vadd.f32 0.0, %v504
        %v506 = vpop.f32.mrf.mxu0
        %507 = vmatprep.mubr.bf16.mxu0 0
        %508 = vmatmul.mubr.bf16.gmra.mxu0 %v369
        %v509 = vpop.f32.mrf.mxu0
        %v510 = vadd.f32 0.0, %v509
        %v511 = vpop.f32.mrf.mxu0
        %v512 = vpop.f32.mrf.mxu0
        %v513 = vadd.f32 0.0, %v512
        %v514 = vpop.f32.mrf.mxu0
        %515 = vmatprep.mubr.bf16.mxu0 0
        %516 = vmatmul.mubr.bf16.gmra.mxu0 %v370
        %v517 = vpop.f32.mrf.mxu0
        %v518 = vadd.f32 0.0, %v517
        %v519 = vpop.f32.mrf.mxu0
        %v520 = vpop.f32.mrf.mxu0
        %v521 = vadd.f32 0.0, %v520
        %v522 = vpop.f32.mrf.mxu0
        %523 = vdwg.mxu0
        %v524 = vadd.f32 %v283, %v462
        %v525 = vadd.f32 %v284, %v465
        %v526 = vadd.f32 %v285, %v470
        %v527 = vadd.f32 %v286, %v473
        %v528 = vadd.f32 %v287, %v478
        %v529 = vadd.f32 %v288, %v481
        %v530 = vadd.f32 %v289, %v486
        %v531 = vadd.f32 %v290, %v489
        %v532 = vadd.f32 %v291, %v494
        %v533 = vadd.f32 %v292, %v497
        %v534 = vadd.f32 %v293, %v502
        %v535 = vadd.f32 %v294, %v505
        %v536 = vadd.f32 %v295, %v510
        %v537 = vadd.f32 %v296, %v513
        %v538 = vadd.f32 %v297, %v518
        %v539 = vadd.f32 %v298, %v521
        %v540 = vmul.f32 %v524, %v524
        %v541 = vmul.f32 %v525, %v525
        %v542 = vmul.f32 %v526, %v526
        %v543 = vmul.f32 %v527, %v527
        %v544 = vmul.f32 %v528, %v528
        %v545 = vmul.f32 %v529, %v529
        %v546 = vmul.f32 %v530, %v530
        %v547 = vmul.f32 %v531, %v531
        %v548 = vmul.f32 %v532, %v532
        %v549 = vmul.f32 %v533, %v533
        %v550 = vmul.f32 %v534, %v534
        %v551 = vmul.f32 %v535, %v535
        %v552 = vmul.f32 %v536, %v536
        %v553 = vmul.f32 %v537, %v537
        %v554 = vmul.f32 %v538, %v538
        %v555 = vmul.f32 %v539, %v539
        %556 = vadd.xlane.f32.xlu0 %v540
        %v557 = vpop.xlane.xlu0 %556
        %558 = vadd.xlane.f32.xlu0 %v541
        %v559 = vpop.xlane.xlu0 %558
        %560 = vadd.xlane.f32.xlu0 %v542
        %v561 = vpop.xlane.xlu0 %560
        %562 = vadd.xlane.f32.xlu0 %v543
        %v563 = vpop.xlane.xlu0 %562
        %564 = vadd.xlane.f32.xlu0 %v544
        %v565 = vpop.xlane.xlu0 %564
        %566 = vadd.xlane.f32.xlu0 %v545
        %v567 = vpop.xlane.xlu0 %566
        %568 = vadd.xlane.f32.xlu0 %v546
        %v569 = vpop.xlane.xlu0 %568
        %570 = vadd.xlane.f32.xlu0 %v547
        %v571 = vpop.xlane.xlu0 %570
        %572 = vadd.xlane.f32.xlu0 %v548
        %v573 = vpop.xlane.xlu0 %572
        %574 = vadd.xlane.f32.xlu0 %v549
        %v575 = vpop.xlane.xlu0 %574
        %576 = vadd.xlane.f32.xlu0 %v550
        %v577 = vpop.xlane.xlu0 %576
        %578 = vadd.xlane.f32.xlu0 %v551
        %v579 = vpop.xlane.xlu0 %578
        %580 = vadd.xlane.f32.xlu0 %v552
        %v581 = vpop.xlane.xlu0 %580
        %582 = vadd.xlane.f32.xlu0 %v553
        %v583 = vpop.xlane.xlu0 %582
        %584 = vadd.xlane.f32.xlu0 %v554
        %v585 = vpop.xlane.xlu0 %584
        %586 = vadd.xlane.f32.xlu0 %v555
        %v587 = vpop.xlane.xlu0 %586
        %v588 = vrcp.pop 128.0
        %v589 = vmul.f32 %v557, %v588
        %v590 = vmul.f32 %v559, %v588
        %v591 = vmul.f32 %v561, %v588
        %v592 = vmul.f32 %v563, %v588
        %v593 = vmul.f32 %v565, %v588
        %v594 = vmul.f32 %v567, %v588
        %v595 = vmul.f32 %v569, %v588
        %v596 = vmul.f32 %v571, %v588
        %v597 = vmul.f32 %v573, %v588
        %v598 = vmul.f32 %v575, %v588
        %v599 = vmul.f32 %v577, %v588
        %v600 = vmul.f32 %v579, %v588
        %v601 = vmul.f32 %v581, %v588
        %v602 = vmul.f32 %v583, %v588
        %v603 = vmul.f32 %v585, %v588
        %v604 = vmul.f32 %v587, %v588
        %v605 = vadd.f32 %v589, 1e-06
        %v606 = vadd.f32 %v590, 1e-06
        %v607 = vadd.f32 %v591, 1e-06
        %v608 = vadd.f32 %v592, 1e-06
        %v609 = vadd.f32 %v593, 1e-06
        %v610 = vadd.f32 %v594, 1e-06
        %v611 = vadd.f32 %v595, 1e-06
        %v612 = vadd.f32 %v596, 1e-06
        %v613 = vadd.f32 %v597, 1e-06
        %v614 = vadd.f32 %v598, 1e-06
        %v615 = vadd.f32 %v599, 1e-06
        %v616 = vadd.f32 %v600, 1e-06
        %v617 = vadd.f32 %v601, 1e-06
        %v618 = vadd.f32 %v602, 1e-06
        %v619 = vadd.f32 %v603, 1e-06
        %v620 = vadd.f32 %v604, 1e-06
        %v621 = vrsqrt.pop %v605
        %v622 = vrsqrt.pop %v606
        %v623 = vrsqrt.pop %v607
        %v624 = vrsqrt.pop %v608
        %v625 = vrsqrt.pop %v609
        %v626 = vrsqrt.pop %v610
        %v627 = vrsqrt.pop %v611
        %v628 = vrsqrt.pop %v612
        %v629 = vrsqrt.pop %v613
        %v630 = vrsqrt.pop %v614
        %v631 = vrsqrt.pop %v615
        %v632 = vrsqrt.pop %v616
        %v633 = vrsqrt.pop %v617
        %v634 = vrsqrt.pop %v618
        %v635 = vrsqrt.pop %v619
        %v636 = vrsqrt.pop %v620
        %v637 = vmul.f32 %v524, %v621
        %v638 = vmul.f32 %v525, %v622
        %v639 = vmul.f32 %v526, %v623
        %v640 = vmul.f32 %v527, %v624
        %v641 = vmul.f32 %v528, %v625
        %v642 = vmul.f32 %v529, %v626
        %v643 = vmul.f32 %v530, %v627
        %v644 = vmul.f32 %v531, %v628
        %v645 = vmul.f32 %v532, %v629
        %v646 = vmul.f32 %v533, %v630
        %v647 = vmul.f32 %v534, %v631
        %v648 = vmul.f32 %v535, %v632
        %v649 = vmul.f32 %v536, %v633
        %v650 = vmul.f32 %v537, %v634
        %v651 = vmul.f32 %v538, %v635
        %v652 = vmul.f32 %v539, %v636
        %v653 = vpack.c.bf16 %v638, %v637
        %v654 = vpack.c.bf16 %v640, %v639
        %v655 = vpack.c.bf16 %v642, %v641
        %v656 = vpack.c.bf16 %v644, %v643
        %v657 = vpack.c.bf16 %v646, %v645
        %v658 = vpack.c.bf16 %v648, %v647
        %v659 = vpack.c.bf16 %v650, %v649
        %v660 = vpack.c.bf16 %v652, %v651
        %v661 = vld [vmem:[%s3] sm:$0xff]
        %v662 = vld [vmem:[%s3 + $0x8] sm:$0xff]
        %v663 = vld [vmem:[%s3 + $0x10] sm:$0xff]
        %v664 = vld [vmem:[%s3 + $0x18] sm:$0xff]
        %v665 = vld [vmem:[%s3 + $0x20] sm:$0xff]
        %v666 = vld [vmem:[%s3 + $0x28] sm:$0xff]
        %v667 = vld [vmem:[%s3 + $0x30] sm:$0xff]
        %v668 = vld [vmem:[%s3 + $0x38] sm:$0xff]
        %v669 = vld [vmem:[%s3 + $0x40] sm:$0xff]
        %v670 = vld [vmem:[%s3 + $0x48] sm:$0xff]
        %v671 = vld [vmem:[%s3 + $0x50] sm:$0xff]
        %v672 = vld [vmem:[%s3 + $0x58] sm:$0xff]
        %v673 = vld [vmem:[%s3 + $0x60] sm:$0xff]
        %v674 = vld [vmem:[%s3 + $0x68] sm:$0xff]
        %v675 = vld [vmem:[%s3 + $0x70] sm:$0xff]
        %v676 = vld [vmem:[%s3 + $0x78] sm:$0xff]
        %v677 = vld [vmem:[%s3 + $0x80] sm:$0xff]
        %v678 = vld [vmem:[%s3 + $0x88] sm:$0xff]
        %v679 = vld [vmem:[%s3 + $0x90] sm:$0xff]
        %v680 = vld [vmem:[%s3 + $0x98] sm:$0xff]
        %v681 = vld [vmem:[%s3 + $0xa0] sm:$0xff]
        %v682 = vld [vmem:[%s3 + $0xa8] sm:$0xff]
        %v683 = vld [vmem:[%s3 + $0xb0] sm:$0xff]
        %v684 = vld [vmem:[%s3 + $0xb8] sm:$0xff]
        %v685 = vld [vmem:[%s3 + $0xc0] sm:$0xff]
        %v686 = vld [vmem:[%s3 + $0xc8] sm:$0xff]
        %v687 = vld [vmem:[%s3 + $0xd0] sm:$0xff]
        %v688 = vld [vmem:[%s3 + $0xd8] sm:$0xff]
        %v689 = vld [vmem:[%s3 + $0xe0] sm:$0xff]
        %v690 = vld [vmem:[%s3 + $0xe8] sm:$0xff]
        %v691 = vld [vmem:[%s3 + $0xf0] sm:$0xff]
        %v692 = vld [vmem:[%s3 + $0xf8] sm:$0xff]
        %v725 = vunpack.c.l.b16 %v661
        %v726 = vunpack.c.h.b16 %v661
        %v727 = vunpack.c.l.b16 %v662
        %v728 = vunpack.c.h.b16 %v662
        %v729 = vunpack.c.l.b16 %v663
        %v730 = vunpack.c.h.b16 %v663
        %v731 = vunpack.c.l.b16 %v664
        %v732 = vunpack.c.h.b16 %v664
        %v733 = vunpack.c.l.b16 %v665
        %v734 = vunpack.c.h.b16 %v665
        %v735 = vunpack.c.l.b16 %v666
        %v736 = vunpack.c.h.b16 %v666
        %v737 = vunpack.c.l.b16 %v667
        %v738 = vunpack.c.h.b16 %v667
        %v739 = vunpack.c.l.b16 %v668
        %v740 = vunpack.c.h.b16 %v668
        %v741 = vunpack.c.l.b16 %v669
        %v742 = vunpack.c.h.b16 %v669
        %v743 = vunpack.c.l.b16 %v670
        %v744 = vunpack.c.h.b16 %v670
        %v745 = vunpack.c.l.b16 %v671
        %v746 = vunpack.c.h.b16 %v671
        %v747 = vunpack.c.l.b16 %v672
        %v748 = vunpack.c.h.b16 %v672
        %v749 = vunpack.c.l.b16 %v673
        %v750 = vunpack.c.h.b16 %v673
        %v751 = vunpack.c.l.b16 %v674
        %v752 = vunpack.c.h.b16 %v674
        %v753 = vunpack.c.l.b16 %v675
        %v754 = vunpack.c.h.b16 %v675
        %v755 = vunpack.c.l.b16 %v676
        %v756 = vunpack.c.h.b16 %v676
        %v757 = vunpack.c.l.b16 %v677
        %v758 = vunpack.c.h.b16 %v677
        %v759 = vunpack.c.l.b16 %v678
        %v760 = vunpack.c.h.b16 %v678
        %v761 = vunpack.c.l.b16 %v679
        %v762 = vunpack.c.h.b16 %v679
        %v763 = vunpack.c.l.b16 %v680
        %v764 = vunpack.c.h.b16 %v680
        %v765 = vunpack.c.l.b16 %v681
        %v766 = vunpack.c.h.b16 %v681
        %v767 = vunpack.c.l.b16 %v682
        %v768 = vunpack.c.h.b16 %v682
        %v769 = vunpack.c.l.b16 %v683
        %v770 = vunpack.c.h.b16 %v683
        %v771 = vunpack.c.l.b16 %v684
        %v772 = vunpack.c.h.b16 %v684
        %v773 = vunpack.c.l.b16 %v685
        %v774 = vunpack.c.h.b16 %v685
        %v775 = vunpack.c.l.b16 %v686
        %v776 = vunpack.c.h.b16 %v686
        %v777 = vunpack.c.l.b16 %v687
        %v778 = vunpack.c.h.b16 %v687
        %v779 = vunpack.c.l.b16 %v688
        %v780 = vunpack.c.h.b16 %v688
        %v781 = vunpack.c.l.b16 %v689
        %v782 = vunpack.c.h.b16 %v689
        %v783 = vunpack.c.l.b16 %v690
        %v784 = vunpack.c.h.b16 %v690
        %v785 = vunpack.c.l.b16 %v691
        %v786 = vunpack.c.h.b16 %v691
        %v787 = vunpack.c.l.b16 %v692
        %v788 = vunpack.c.h.b16 %v692
        %v789 = vpack.c.b16 %v729, %v725
        %v790 = vpack.c.b16 %v730, %v726
        %v791 = vpack.c.b16 %v731, %v727
        %v792 = vpack.c.b16 %v732, %v728
        %v793 = vpack.c.b16 %v737, %v733
        %v794 = vpack.c.b16 %v738, %v734
        %v795 = vpack.c.b16 %v739, %v735
        %v796 = vpack.c.b16 %v740, %v736
        %v797 = vpack.c.b16 %v745, %v741
        %v798 = vpack.c.b16 %v746, %v742
        %v799 = vpack.c.b16 %v747, %v743
        %v800 = vpack.c.b16 %v748, %v744
        %v801 = vpack.c.b16 %v753, %v749
        %v802 = vpack.c.b16 %v754, %v750
        %v803 = vpack.c.b16 %v755, %v751
        %v804 = vpack.c.b16 %v756, %v752
        %v805 = vpack.c.b16 %v761, %v757
        %v806 = vpack.c.b16 %v762, %v758
        %v807 = vpack.c.b16 %v763, %v759
        %v808 = vpack.c.b16 %v764, %v760
        %v809 = vpack.c.b16 %v769, %v765
        %v810 = vpack.c.b16 %v770, %v766
        %v811 = vpack.c.b16 %v771, %v767
        %v812 = vpack.c.b16 %v772, %v768
        %v813 = vpack.c.b16 %v777, %v773
        %v814 = vpack.c.b16 %v778, %v774
        %v815 = vpack.c.b16 %v779, %v775
        %v816 = vpack.c.b16 %v780, %v776
        %v817 = vpack.c.b16 %v785, %v781
        %v818 = vpack.c.b16 %v786, %v782
        %v819 = vpack.c.b16 %v787, %v783
        %v820 = vpack.c.b16 %v788, %v784
        %853 = vmatprep.subr.bf16.mxu0 %v818
        %854 = vmatpush1.bf16.msra.mxu0 %v817
        %855 = vmatprep.subr.bf16.mxu0 %v814
        %856 = vmatpush1.bf16.msra.mxu0 %v813
        %857 = vmatprep.subr.bf16.mxu0 %v810
        %858 = vmatpush1.bf16.msra.mxu0 %v809
        %859 = vmatprep.subr.bf16.mxu0 %v806
        %860 = vmatpush1.bf16.msra.mxu0 %v805
        %861 = vmatprep.subr.bf16.mxu0 %v802
        %862 = vmatpush1.bf16.msra.mxu0 %v801
        %863 = vmatprep.subr.bf16.mxu0 %v798
        %864 = vmatpush1.bf16.msra.mxu0 %v797
        %865 = vmatprep.subr.bf16.mxu0 %v794
        %866 = vmatpush1.bf16.msra.mxu0 %v793
        %867 = vmatprep.subr.bf16.mxu0 %v790
        %868 = vmatpush1.bf16.msra.mxu0 %v789
        %869 = vmatprep.subr.bf16.mxu0 0
        %870 = vmatpush2.bf16.msra.mxu0 0
        %871 = vmatprep.subr.bf16.mxu0 0
        %872 = vmatpush2.bf16.msra.mxu0 0
        %873 = vmatprep.subr.bf16.mxu0 0
        %874 = vmatpush2.bf16.msra.mxu0 0
        %875 = vmatprep.subr.bf16.mxu0 0
        %876 = vmatpush2.bf16.msra.mxu0 0
        %877 = vmatprep.subr.bf16.mxu0 0
        %878 = vmatpush2.bf16.msra.mxu0 0
        %879 = vmatprep.subr.bf16.mxu0 0
        %880 = vmatpush2.bf16.msra.mxu0 0
        %881 = vmatprep.subr.bf16.mxu0 0
        %882 = vmatpush2.bf16.msra.mxu0 0
        %883 = vmatprep.subr.bf16.mxu0 0
        %884 = vmatpush2.bf16.msra.mxu0 0
        %885 = vmatprep.mubr.bf16.mxu0 0
        %886 = vmatmul.mubr.bf16.gmra.mxu0 %v653
        %v887 = vpop.f32.mrf.mxu0
        %v888 = vadd.f32 0.0, %v887
        %v889 = vpop.f32.mrf.mxu0
        %v890 = vadd.f32 0.0, %v889
        %v891 = vpop.f32.mrf.mxu0
        %v892 = vadd.f32 0.0, %v891
        %v893 = vpop.f32.mrf.mxu0
        %v894 = vadd.f32 0.0, %v893
        %895 = vmatprep.mubr.bf16.mxu0 0
        %896 = vmatmul.mubr.bf16.gmra.mxu0 %v654
        %v897 = vpop.f32.mrf.mxu0
        %v898 = vadd.f32 0.0, %v897
        %v899 = vpop.f32.mrf.mxu0
        %v900 = vadd.f32 0.0, %v899
        %v901 = vpop.f32.mrf.mxu0
        %v902 = vadd.f32 0.0, %v901
        %v903 = vpop.f32.mrf.mxu0
        %v904 = vadd.f32 0.0, %v903
        %905 = vmatprep.mubr.bf16.mxu0 0
        %906 = vmatmul.mubr.bf16.gmra.mxu0 %v655
        %v907 = vpop.f32.mrf.mxu0
        %v908 = vadd.f32 0.0, %v907
        %v909 = vpop.f32.mrf.mxu0
        %v910 = vadd.f32 0.0, %v909
        %v911 = vpop.f32.mrf.mxu0
        %v912 = vadd.f32 0.0, %v911
        %v913 = vpop.f32.mrf.mxu0
        %v914 = vadd.f32 0.0, %v913
        %915 = vmatprep.mubr.bf16.mxu0 0
        %916 = vmatmul.mubr.bf16.gmra.mxu0 %v656
        %v917 = vpop.f32.mrf.mxu0
        %v918 = vadd.f32 0.0, %v917
        %v919 = vpop.f32.mrf.mxu0
        %v920 = vadd.f32 0.0, %v919
        %v921 = vpop.f32.mrf.mxu0
        %v922 = vadd.f32 0.0, %v921
        %v923 = vpop.f32.mrf.mxu0
        %v924 = vadd.f32 0.0, %v923
        %925 = vmatprep.mubr.bf16.mxu0 0
        %926 = vmatmul.mubr.bf16.gmra.mxu0 %v657
        %v927 = vpop.f32.mrf.mxu0
        %v928 = vadd.f32 0.0, %v927
        %v929 = vpop.f32.mrf.mxu0
        %v930 = vadd.f32 0.0, %v929
        %v931 = vpop.f32.mrf.mxu0
        %v932 = vadd.f32 0.0, %v931
        %v933 = vpop.f32.mrf.mxu0
        %v934 = vadd.f32 0.0, %v933
        %935 = vmatprep.mubr.bf16.mxu0 0
        %936 = vmatmul.mubr.bf16.gmra.mxu0 %v658
        %v937 = vpop.f32.mrf.mxu0
        %v938 = vadd.f32 0.0, %v937
        %v939 = vpop.f32.mrf.mxu0
        %v940 = vadd.f32 0.0, %v939
        %v941 = vpop.f32.mrf.mxu0
        %v942 = vadd.f32 0.0, %v941
        %v943 = vpop.f32.mrf.mxu0
        %v944 = vadd.f32 0.0, %v943
        %945 = vmatprep.mubr.bf16.mxu0 0
        %946 = vmatmul.mubr.bf16.gmra.mxu0 %v659
        %v947 = vpop.f32.mrf.mxu0
        %v948 = vadd.f32 0.0, %v947
        %v949 = vpop.f32.mrf.mxu0
        %v950 = vadd.f32 0.0, %v949
        %v951 = vpop.f32.mrf.mxu0
        %v952 = vadd.f32 0.0, %v951
        %v953 = vpop.f32.mrf.mxu0
        %v954 = vadd.f32 0.0, %v953
        %955 = vmatprep.mubr.bf16.mxu0 0
        %956 = vmatmul.mubr.bf16.gmra.mxu0 %v660
        %v957 = vpop.f32.mrf.mxu0
        %v958 = vadd.f32 0.0, %v957
        %v959 = vpop.f32.mrf.mxu0
        %v960 = vadd.f32 0.0, %v959
        %v961 = vpop.f32.mrf.mxu0
        %v962 = vadd.f32 0.0, %v961
        %v963 = vpop.f32.mrf.mxu0
        %v964 = vadd.f32 0.0, %v963
        %965 = vdwg.mxu0
        %966 = vmatprep.subr.bf16.mxu0 %v820
        %967 = vmatpush1.bf16.msra.mxu0 %v819
        %968 = vmatprep.subr.bf16.mxu0 %v816
        %969 = vmatpush1.bf16.msra.mxu0 %v815
        %970 = vmatprep.subr.bf16.mxu0 %v812
        %971 = vmatpush1.bf16.msra.mxu0 %v811
        %972 = vmatprep.subr.bf16.mxu0 %v808
        %973 = vmatpush1.bf16.msra.mxu0 %v807
        %974 = vmatprep.subr.bf16.mxu0 %v804
        %975 = vmatpush1.bf16.msra.mxu0 %v803
        %976 = vmatprep.subr.bf16.mxu0 %v800
        %977 = vmatpush1.bf16.msra.mxu0 %v799
        %978 = vmatprep.subr.bf16.mxu0 %v796
        %979 = vmatpush1.bf16.msra.mxu0 %v795
        %980 = vmatprep.subr.bf16.mxu0 %v792
        %981 = vmatpush1.bf16.msra.mxu0 %v791
        %982 = vmatprep.subr.bf16.mxu0 0
        %983 = vmatpush2.bf16.msra.mxu0 0
        %984 = vmatprep.subr.bf16.mxu0 0
        %985 = vmatpush2.bf16.msra.mxu0 0
        %986 = vmatprep.subr.bf16.mxu0 0
        %987 = vmatpush2.bf16.msra.mxu0 0
        %988 = vmatprep.subr.bf16.mxu0 0
        %989 = vmatpush2.bf16.msra.mxu0 0
        %990 = vmatprep.subr.bf16.mxu0 0
        %991 = vmatpush2.bf16.msra.mxu0 0
        %992 = vmatprep.subr.bf16.mxu0 0
        %993 = vmatpush2.bf16.msra.mxu0 0
        %994 = vmatprep.subr.bf16.mxu0 0
        %995 = vmatpush2.bf16.msra.mxu0 0
        %996 = vmatprep.subr.bf16.mxu0 0
        %997 = vmatpush2.bf16.msra.mxu0 0
        %998 = vmatprep.mubr.bf16.mxu0 0
        %999 = vmatmul.mubr.bf16.gmra.mxu0 %v653
        %v1000 = vpop.f32.mrf.mxu0
        %v1001 = vadd.f32 0.0, %v1000
        %v1002 = vpop.f32.mrf.mxu0
        %v1003 = vadd.f32 0.0, %v1002
        %v1004 = vpop.f32.mrf.mxu0
        %v1005 = vadd.f32 0.0, %v1004
        %v1006 = vpop.f32.mrf.mxu0
        %v1007 = vadd.f32 0.0, %v1006
        %1008 = vmatprep.mubr.bf16.mxu0 0
        %1009 = vmatmul.mubr.bf16.gmra.mxu0 %v654
        %v1010 = vpop.f32.mrf.mxu0
        %v1011 = vadd.f32 0.0, %v1010
        %v1012 = vpop.f32.mrf.mxu0
        %v1013 = vadd.f32 0.0, %v1012
        %v1014 = vpop.f32.mrf.mxu0
        %v1015 = vadd.f32 0.0, %v1014
        %v1016 = vpop.f32.mrf.mxu0
        %v1017 = vadd.f32 0.0, %v1016
        %1018 = vmatprep.mubr.bf16.mxu0 0
        %1019 = vmatmul.mubr.bf16.gmra.mxu0 %v655
        %v1020 = vpop.f32.mrf.mxu0
        %v1021 = vadd.f32 0.0, %v1020
        %v1022 = vpop.f32.mrf.mxu0
        %v1023 = vadd.f32 0.0, %v1022
        %v1024 = vpop.f32.mrf.mxu0
        %v1025 = vadd.f32 0.0, %v1024
        %v1026 = vpop.f32.mrf.mxu0
        %v1027 = vadd.f32 0.0, %v1026
        %1028 = vmatprep.mubr.bf16.mxu0 0
        %1029 = vmatmul.mubr.bf16.gmra.mxu0 %v656
        %v1030 = vpop.f32.mrf.mxu0
        %v1031 = vadd.f32 0.0, %v1030
        %v1032 = vpop.f32.mrf.mxu0
        %v1033 = vadd.f32 0.0, %v1032
        %v1034 = vpop.f32.mrf.mxu0
        %v1035 = vadd.f32 0.0, %v1034
        %v1036 = vpop.f32.mrf.mxu0
        %v1037 = vadd.f32 0.0, %v1036
        %1038 = vmatprep.mubr.bf16.mxu0 0
        %1039 = vmatmul.mubr.bf16.gmra.mxu0 %v657
        %v1040 = vpop.f32.mrf.mxu0
        %v1041 = vadd.f32 0.0, %v1040
        %v1042 = vpop.f32.mrf.mxu0
        %v1043 = vadd.f32 0.0, %v1042
        %v1044 = vpop.f32.mrf.mxu0
        %v1045 = vadd.f32 0.0, %v1044
        %v1046 = vpop.f32.mrf.mxu0
        %v1047 = vadd.f32 0.0, %v1046
        %1048 = vmatprep.mubr.bf16.mxu0 0
        %1049 = vmatmul.mubr.bf16.gmra.mxu0 %v658
        %v1050 = vpop.f32.mrf.mxu0
        %v1051 = vadd.f32 0.0, %v1050
        %v1052 = vpop.f32.mrf.mxu0
        %v1053 = vadd.f32 0.0, %v1052
        %v1054 = vpop.f32.mrf.mxu0
        %v1055 = vadd.f32 0.0, %v1054
        %v1056 = vpop.f32.mrf.mxu0
        %v1057 = vadd.f32 0.0, %v1056
        %1058 = vmatprep.mubr.bf16.mxu0 0
        %1059 = vmatmul.mubr.bf16.gmra.mxu0 %v659
        %v1060 = vpop.f32.mrf.mxu0
        %v1061 = vadd.f32 0.0, %v1060
        %v1062 = vpop.f32.mrf.mxu0
        %v1063 = vadd.f32 0.0, %v1062
        %v1064 = vpop.f32.mrf.mxu0
        %v1065 = vadd.f32 0.0, %v1064
        %v1066 = vpop.f32.mrf.mxu0
        %v1067 = vadd.f32 0.0, %v1066
        %1068 = vmatprep.mubr.bf16.mxu0 0
        %1069 = vmatmul.mubr.bf16.gmra.mxu0 %v660
        %v1070 = vpop.f32.mrf.mxu0
        %v1071 = vadd.f32 0.0, %v1070
        %v1072 = vpop.f32.mrf.mxu0
        %v1073 = vadd.f32 0.0, %v1072
        %v1074 = vpop.f32.mrf.mxu0
        %v1075 = vadd.f32 0.0, %v1074
        %v1076 = vpop.f32.mrf.mxu0
        %v1077 = vadd.f32 0.0, %v1076
        %1078 = vdwg.mxu0
        %v1079 = vxor.u32 %v888, 2147483648
        %v1080 = vxor.u32 %v890, 2147483648
        %v1081 = vxor.u32 %v892, 2147483648
        %v1082 = vxor.u32 %v894, 2147483648
        %v1083 = vxor.u32 %v898, 2147483648
        %v1084 = vxor.u32 %v900, 2147483648
        %v1085 = vxor.u32 %v902, 2147483648
        %v1086 = vxor.u32 %v904, 2147483648
        %v1087 = vxor.u32 %v908, 2147483648
        %v1088 = vxor.u32 %v910, 2147483648
        %v1089 = vxor.u32 %v912, 2147483648
        %v1090 = vxor.u32 %v914, 2147483648
        %v1091 = vxor.u32 %v918, 2147483648
        %v1092 = vxor.u32 %v920, 2147483648
        %v1093 = vxor.u32 %v922, 2147483648
        %v1094 = vxor.u32 %v924, 2147483648
        %v1095 = vxor.u32 %v928, 2147483648
        %v1096 = vxor.u32 %v930, 2147483648
        %v1097 = vxor.u32 %v932, 2147483648
        %v1098 = vxor.u32 %v934, 2147483648
        %v1099 = vxor.u32 %v938, 2147483648
        %v1100 = vxor.u32 %v940, 2147483648
        %v1101 = vxor.u32 %v942, 2147483648
        %v1102 = vxor.u32 %v944, 2147483648
        %v1103 = vxor.u32 %v948, 2147483648
        %v1104 = vxor.u32 %v950, 2147483648
        %v1105 = vxor.u32 %v952, 2147483648
        %v1106 = vxor.u32 %v954, 2147483648
        %v1107 = vxor.u32 %v958, 2147483648
        %v1108 = vxor.u32 %v960, 2147483648
        %v1109 = vxor.u32 %v962, 2147483648
        %v1110 = vxor.u32 %v964, 2147483648
        %v1111 = vmul.f32 %v1079, 1.442695
        %v1112 = vpow.pop %v1111
        %v1113 = vmul.f32 %v1080, 1.442695
        %v1114 = vpow.pop %v1113
        %v1115 = vmul.f32 %v1081, 1.442695
        %v1116 = vpow.pop %v1115
        %v1117 = vmul.f32 %v1082, 1.442695
        %v1118 = vpow.pop %v1117
        %v1119 = vmul.f32 %v1083, 1.442695
        %v1120 = vpow.pop %v1119
        %v1121 = vmul.f32 %v1084, 1.442695
        %v1122 = vpow.pop %v1121
        %v1123 = vmul.f32 %v1085, 1.442695
        %v1124 = vpow.pop %v1123
        %v1125 = vmul.f32 %v1086, 1.442695
        %v1126 = vpow.pop %v1125
        %v1127 = vmul.f32 %v1087, 1.442695
        %v1128 = vpow.pop %v1127
        %v1129 = vmul.f32 %v1088, 1.442695
        %v1130 = vpow.pop %v1129
        %v1131 = vmul.f32 %v1089, 1.442695
        %v1132 = vpow.pop %v1131
        %v1133 = vmul.f32 %v1090, 1.442695
        %v1134 = vpow.pop %v1133
        %v1135 = vmul.f32 %v1091, 1.442695
        %v1136 = vpow.pop %v1135
        %v1137 = vmul.f32 %v1092, 1.442695
        %v1138 = vpow.pop %v1137
        %v1139 = vmul.f32 %v1093, 1.442695
        %v1140 = vpow.pop %v1139
        %v1141 = vmul.f32 %v1094, 1.442695
        %v1142 = vpow.pop %v1141
        %v1143 = vmul.f32 %v1095, 1.442695
        %v1144 = vpow.pop %v1143
        %v1145 = vmul.f32 %v1096, 1.442695
        %v1146 = vpow.pop %v1145
        %v1147 = vmul.f32 %v1097, 1.442695
        %v1148 = vpow.pop %v1147
        %v1149 = vmul.f32 %v1098, 1.442695
        %v1150 = vpow.pop %v1149
        %v1151 = vmul.f32 %v1099, 1.442695
        %v1152 = vpow.pop %v1151
        %v1153 = vmul.f32 %v1100, 1.442695
        %v1154 = vpow.pop %v1153
        %v1155 = vmul.f32 %v1101, 1.442695
        %v1156 = vpow.pop %v1155
        %v1157 = vmul.f32 %v1102, 1.442695
        %v1158 = vpow.pop %v1157
        %v1159 = vmul.f32 %v1103, 1.442695
        %v1160 = vpow.pop %v1159
        %v1161 = vmul.f32 %v1104, 1.442695
        %v1162 = vpow.pop %v1161
        %v1163 = vmul.f32 %v1105, 1.442695
        %v1164 = vpow.pop %v1163
        %v1165 = vmul.f32 %v1106, 1.442695
        %v1166 = vpow.pop %v1165
        %v1167 = vmul.f32 %v1107, 1.442695
        %v1168 = vpow.pop %v1167
        %v1169 = vmul.f32 %v1108, 1.442695
        %v1170 = vpow.pop %v1169
        %v1171 = vmul.f32 %v1109, 1.442695
        %v1172 = vpow.pop %v1171
        %v1173 = vmul.f32 %v1110, 1.442695
        %v1174 = vpow.pop %v1173
        %v1175 = vadd.f32 %v1112, 1.0
        %v1176 = vadd.f32 %v1114, 1.0
        %v1177 = vadd.f32 %v1116, 1.0
        %v1178 = vadd.f32 %v1118, 1.0
        %v1179 = vadd.f32 %v1120, 1.0
        %v1180 = vadd.f32 %v1122, 1.0
        %v1181 = vadd.f32 %v1124, 1.0
        %v1182 = vadd.f32 %v1126, 1.0
        %v1183 = vadd.f32 %v1128, 1.0
        %v1184 = vadd.f32 %v1130, 1.0
        %v1185 = vadd.f32 %v1132, 1.0
        %v1186 = vadd.f32 %v1134, 1.0
        %v1187 = vadd.f32 %v1136, 1.0
        %v1188 = vadd.f32 %v1138, 1.0
        %v1189 = vadd.f32 %v1140, 1.0
        %v1190 = vadd.f32 %v1142, 1.0
        %v1191 = vadd.f32 %v1144, 1.0
        %v1192 = vadd.f32 %v1146, 1.0
        %v1193 = vadd.f32 %v1148, 1.0
        %v1194 = vadd.f32 %v1150, 1.0
        %v1195 = vadd.f32 %v1152, 1.0
        %v1196 = vadd.f32 %v1154, 1.0
        %v1197 = vadd.f32 %v1156, 1.0
        %v1198 = vadd.f32 %v1158, 1.0
        %v1199 = vadd.f32 %v1160, 1.0
        %v1200 = vadd.f32 %v1162, 1.0
        %v1201 = vadd.f32 %v1164, 1.0
        %v1202 = vadd.f32 %v1166, 1.0
        %v1203 = vadd.f32 %v1168, 1.0
        %v1204 = vadd.f32 %v1170, 1.0
        %v1205 = vadd.f32 %v1172, 1.0
        %v1206 = vadd.f32 %v1174, 1.0
        %v1207 = vrcp.pop %v1175
        %v1208 = vmul.f32 1.0, %v1207
        %v1209 = vrcp.pop %v1176
        %v1210 = vmul.f32 1.0, %v1209
        %v1211 = vrcp.pop %v1177
        %v1212 = vmul.f32 1.0, %v1211
        %v1213 = vrcp.pop %v1178
        %v1214 = vmul.f32 1.0, %v1213
        %v1215 = vrcp.pop %v1179
        %v1216 = vmul.f32 1.0, %v1215
        %v1217 = vrcp.pop %v1180
        %v1218 = vmul.f32 1.0, %v1217
        %v1219 = vrcp.pop %v1181
        %v1220 = vmul.f32 1.0, %v1219
        %v1221 = vrcp.pop %v1182
        %v1222 = vmul.f32 1.0, %v1221
        %v1223 = vrcp.pop %v1183
        %v1224 = vmul.f32 1.0, %v1223
        %v1225 = vrcp.pop %v1184
        %v1226 = vmul.f32 1.0, %v1225
        %v1227 = vrcp.pop %v1185
        %v1228 = vmul.f32 1.0, %v1227
        %v1229 = vrcp.pop %v1186
        %v1230 = vmul.f32 1.0, %v1229
        %v1231 = vrcp.pop %v1187
        %v1232 = vmul.f32 1.0, %v1231
        %v1233 = vrcp.pop %v1188
        %v1234 = vmul.f32 1.0, %v1233
        %v1235 = vrcp.pop %v1189
        %v1236 = vmul.f32 1.0, %v1235
        %v1237 = vrcp.pop %v1190
        %v1238 = vmul.f32 1.0, %v1237
        %v1239 = vrcp.pop %v1191
        %v1240 = vmul.f32 1.0, %v1239
        %v1241 = vrcp.pop %v1192
        %v1242 = vmul.f32 1.0, %v1241
        %v1243 = vrcp.pop %v1193
        %v1244 = vmul.f32 1.0, %v1243
        %v1245 = vrcp.pop %v1194
        %v1246 = vmul.f32 1.0, %v1245
        %v1247 = vrcp.pop %v1195
        %v1248 = vmul.f32 1.0, %v1247
        %v1249 = vrcp.pop %v1196
        %v1250 = vmul.f32 1.0, %v1249
        %v1251 = vrcp.pop %v1197
        %v1252 = vmul.f32 1.0, %v1251
        %v1253 = vrcp.pop %v1198
        %v1254 = vmul.f32 1.0, %v1253
        %v1255 = vrcp.pop %v1199
        %v1256 = vmul.f32 1.0, %v1255
        %v1257 = vrcp.pop %v1200
        %v1258 = vmul.f32 1.0, %v1257
        %v1259 = vrcp.pop %v1201
        %v1260 = vmul.f32 1.0, %v1259
        %v1261 = vrcp.pop %v1202
        %v1262 = vmul.f32 1.0, %v1261
        %v1263 = vrcp.pop %v1203
        %v1264 = vmul.f32 1.0, %v1263
        %v1265 = vrcp.pop %v1204
        %v1266 = vmul.f32 1.0, %v1265
        %v1267 = vrcp.pop %v1205
        %v1268 = vmul.f32 1.0, %v1267
        %v1269 = vrcp.pop %v1206
        %v1270 = vmul.f32 1.0, %v1269
        %v1271 = vmul.f32 %v888, %v1208
        %v1272 = vmul.f32 %v890, %v1210
        %v1273 = vmul.f32 %v892, %v1212
        %v1274 = vmul.f32 %v894, %v1214
        %v1275 = vmul.f32 %v898, %v1216
        %v1276 = vmul.f32 %v900, %v1218
        %v1277 = vmul.f32 %v902, %v1220
        %v1278 = vmul.f32 %v904, %v1222
        %v1279 = vmul.f32 %v908, %v1224
        %v1280 = vmul.f32 %v910, %v1226
        %v1281 = vmul.f32 %v912, %v1228
        %v1282 = vmul.f32 %v914, %v1230
        %v1283 = vmul.f32 %v918, %v1232
        %v1284 = vmul.f32 %v920, %v1234
        %v1285 = vmul.f32 %v922, %v1236
        %v1286 = vmul.f32 %v924, %v1238
        %v1287 = vmul.f32 %v928, %v1240
        %v1288 = vmul.f32 %v930, %v1242
        %v1289 = vmul.f32 %v932, %v1244
        %v1290 = vmul.f32 %v934, %v1246
        %v1291 = vmul.f32 %v938, %v1248
        %v1292 = vmul.f32 %v940, %v1250
        %v1293 = vmul.f32 %v942, %v1252
        %v1294 = vmul.f32 %v944, %v1254
        %v1295 = vmul.f32 %v948, %v1256
        %v1296 = vmul.f32 %v950, %v1258
        %v1297 = vmul.f32 %v952, %v1260
        %v1298 = vmul.f32 %v954, %v1262
        %v1299 = vmul.f32 %v958, %v1264
        %v1300 = vmul.f32 %v960, %v1266
        %v1301 = vmul.f32 %v962, %v1268
        %v1302 = vmul.f32 %v964, %v1270
        %v1303 = vmul.f32 %v1271, %v1001
        %v1304 = vmul.f32 %v1272, %v1003
        %v1305 = vmul.f32 %v1273, %v1005
        %v1306 = vmul.f32 %v1274, %v1007
        %v1307 = vmul.f32 %v1275, %v1011
        %v1308 = vmul.f32 %v1276, %v1013
        %v1309 = vmul.f32 %v1277, %v1015
        %v1310 = vmul.f32 %v1278, %v1017
        %v1311 = vmul.f32 %v1279, %v1021
        %v1312 = vmul.f32 %v1280, %v1023
        %v1313 = vmul.f32 %v1281, %v1025
        %v1314 = vmul.f32 %v1282, %v1027
        %v1315 = vmul.f32 %v1283, %v1031
        %v1316 = vmul.f32 %v1284, %v1033
        %v1317 = vmul.f32 %v1285, %v1035
        %v1318 = vmul.f32 %v1286, %v1037
        %v1319 = vmul.f32 %v1287, %v1041
        %v1320 = vmul.f32 %v1288, %v1043
        %v1321 = vmul.f32 %v1289, %v1045
        %v1322 = vmul.f32 %v1290, %v1047
        %v1323 = vmul.f32 %v1291, %v1051
        %v1324 = vmul.f32 %v1292, %v1053
        %v1325 = vmul.f32 %v1293, %v1055
        %v1326 = vmul.f32 %v1294, %v1057
        %v1327 = vmul.f32 %v1295, %v1061
        %v1328 = vmul.f32 %v1296, %v1063
        %v1329 = vmul.f32 %v1297, %v1065
        %v1330 = vmul.f32 %v1298, %v1067
        %v1331 = vmul.f32 %v1299, %v1071
        %v1332 = vmul.f32 %v1300, %v1073
        %v1333 = vmul.f32 %v1301, %v1075
        %v1334 = vmul.f32 %v1302, %v1077
        %v1335 = vpack.c.bf16 %v1305, %v1303
        %v1336 = vpack.c.bf16 %v1306, %v1304
        %v1337 = vpack.c.bf16 %v1309, %v1307
        %v1338 = vpack.c.bf16 %v1310, %v1308
        %v1339 = vpack.c.bf16 %v1313, %v1311
        %v1340 = vpack.c.bf16 %v1314, %v1312
        %v1341 = vpack.c.bf16 %v1317, %v1315
        %v1342 = vpack.c.bf16 %v1318, %v1316
        %v1343 = vpack.c.bf16 %v1321, %v1319
        %v1344 = vpack.c.bf16 %v1322, %v1320
        %v1345 = vpack.c.bf16 %v1325, %v1323
        %v1346 = vpack.c.bf16 %v1326, %v1324
        %v1347 = vpack.c.bf16 %v1329, %v1327
        %v1348 = vpack.c.bf16 %v1330, %v1328
        %v1349 = vpack.c.bf16 %v1333, %v1331
        %v1350 = vpack.c.bf16 %v1334, %v1332
        %v1351 = vld [vmem:[%s4] sm:$0xf]
        %v1352 = vld [vmem:[%s4 + $0x4] sm:$0xf]
        %v1353 = vld [vmem:[%s4 + $0x8] sm:$0xf]
        %v1354 = vld [vmem:[%s4 + $0xc] sm:$0xf]
        %v1355 = vld [vmem:[%s4 + $0x10] sm:$0xf]
        %v1356 = vld [vmem:[%s4 + $0x14] sm:$0xf]
        %v1357 = vld [vmem:[%s4 + $0x18] sm:$0xf]
        %v1358 = vld [vmem:[%s4 + $0x1c] sm:$0xf]
        %v1359 = vld [vmem:[%s4 + $0x20] sm:$0xf]
        %v1360 = vld [vmem:[%s4 + $0x24] sm:$0xf]
        %v1361 = vld [vmem:[%s4 + $0x28] sm:$0xf]
        %v1362 = vld [vmem:[%s4 + $0x2c] sm:$0xf]
        %v1363 = vld [vmem:[%s4 + $0x30] sm:$0xf]
        %v1364 = vld [vmem:[%s4 + $0x34] sm:$0xf]
        %v1365 = vld [vmem:[%s4 + $0x38] sm:$0xf]
        %v1366 = vld [vmem:[%s4 + $0x3c] sm:$0xf]
        %v1367 = vld [vmem:[%s4 + $0x40] sm:$0xf]
        %v1368 = vld [vmem:[%s4 + $0x44] sm:$0xf]
        %v1369 = vld [vmem:[%s4 + $0x48] sm:$0xf]
        %v1370 = vld [vmem:[%s4 + $0x4c] sm:$0xf]
        %v1371 = vld [vmem:[%s4 + $0x50] sm:$0xf]
        %v1372 = vld [vmem:[%s4 + $0x54] sm:$0xf]
        %v1373 = vld [vmem:[%s4 + $0x58] sm:$0xf]
        %v1374 = vld [vmem:[%s4 + $0x5c] sm:$0xf]
        %v1375 = vld [vmem:[%s4 + $0x60] sm:$0xf]
        %v1376 = vld [vmem:[%s4 + $0x64] sm:$0xf]
        %v1377 = vld [vmem:[%s4 + $0x68] sm:$0xf]
        %v1378 = vld [vmem:[%s4 + $0x6c] sm:$0xf]
        %v1379 = vld [vmem:[%s4 + $0x70] sm:$0xf]
        %v1380 = vld [vmem:[%s4 + $0x74] sm:$0xf]
        %v1381 = vld [vmem:[%s4 + $0x78] sm:$0xf]
        %v1382 = vld [vmem:[%s4 + $0x7c] sm:$0xf]
        %v1415 = vunpack.c.l.b16 %v1351
        %v1416 = vunpack.c.l.b16 %v1352
        %v1417 = vunpack.c.l.b16 %v1353
        %v1418 = vunpack.c.l.b16 %v1354
        %v1419 = vunpack.c.l.b16 %v1355
        %v1420 = vunpack.c.l.b16 %v1356
        %v1421 = vunpack.c.l.b16 %v1357
        %v1422 = vunpack.c.l.b16 %v1358
        %v1423 = vunpack.c.l.b16 %v1359
        %v1424 = vunpack.c.l.b16 %v1360
        %v1425 = vunpack.c.l.b16 %v1361
        %v1426 = vunpack.c.l.b16 %v1362
        %v1427 = vunpack.c.l.b16 %v1363
        %v1428 = vunpack.c.l.b16 %v1364
        %v1429 = vunpack.c.l.b16 %v1365
        %v1430 = vunpack.c.l.b16 %v1366
        %v1431 = vunpack.c.l.b16 %v1367
        %v1432 = vunpack.c.l.b16 %v1368
        %v1433 = vunpack.c.l.b16 %v1369
        %v1434 = vunpack.c.l.b16 %v1370
        %v1435 = vunpack.c.l.b16 %v1371
        %v1436 = vunpack.c.l.b16 %v1372
        %v1437 = vunpack.c.l.b16 %v1373
        %v1438 = vunpack.c.l.b16 %v1374
        %v1439 = vunpack.c.l.b16 %v1375
        %v1440 = vunpack.c.l.b16 %v1376
        %v1441 = vunpack.c.l.b16 %v1377
        %v1442 = vunpack.c.l.b16 %v1378
        %v1443 = vunpack.c.l.b16 %v1379
        %v1444 = vunpack.c.l.b16 %v1380
        %v1445 = vunpack.c.l.b16 %v1381
        %v1446 = vunpack.c.l.b16 %v1382
        %v1447 = vpack.c.b16 %v1416, %v1415
        %v1448 = vpack.c.b16 %v1418, %v1417
        %v1449 = vpack.c.b16 %v1420, %v1419
        %v1450 = vpack.c.b16 %v1422, %v1421
        %v1451 = vpack.c.b16 %v1424, %v1423
        %v1452 = vpack.c.b16 %v1426, %v1425
        %v1453 = vpack.c.b16 %v1428, %v1427
        %v1454 = vpack.c.b16 %v1430, %v1429
        %v1455 = vpack.c.b16 %v1432, %v1431
        %v1456 = vpack.c.b16 %v1434, %v1433
        %v1457 = vpack.c.b16 %v1436, %v1435
        %v1458 = vpack.c.b16 %v1438, %v1437
        %v1459 = vpack.c.b16 %v1440, %v1439
        %v1460 = vpack.c.b16 %v1442, %v1441
        %v1461 = vpack.c.b16 %v1444, %v1443
        %v1462 = vpack.c.b16 %v1446, %v1445
        %1479 = vmatprep.subr.bf16.mxu0 0
        %1480 = vmatpush1.bf16.msra.mxu0 %v1454
        %1481 = vmatprep.subr.bf16.mxu0 0
        %1482 = vmatpush1.bf16.msra.mxu0 %v1453
        %1483 = vmatprep.subr.bf16.mxu0 0
        %1484 = vmatpush1.bf16.msra.mxu0 %v1452
        %1485 = vmatprep.subr.bf16.mxu0 0
        %1486 = vmatpush1.bf16.msra.mxu0 %v1451
        %1487 = vmatprep.subr.bf16.mxu0 0
        %1488 = vmatpush1.bf16.msra.mxu0 %v1450
        %1489 = vmatprep.subr.bf16.mxu0 0
        %1490 = vmatpush1.bf16.msra.mxu0 %v1449
        %1491 = vmatprep.subr.bf16.mxu0 0
        %1492 = vmatpush1.bf16.msra.mxu0 %v1448
        %1493 = vmatprep.subr.bf16.mxu0 0
        %1494 = vmatpush1.bf16.msra.mxu0 %v1447
        %1495 = vmatprep.subr.bf16.mxu0 0
        %1496 = vmatpush2.bf16.msra.mxu0 %v1462
        %1497 = vmatprep.subr.bf16.mxu0 0
        %1498 = vmatpush2.bf16.msra.mxu0 %v1461
        %1499 = vmatprep.subr.bf16.mxu0 0
        %1500 = vmatpush2.bf16.msra.mxu0 %v1460
        %1501 = vmatprep.subr.bf16.mxu0 0
        %1502 = vmatpush2.bf16.msra.mxu0 %v1459
        %1503 = vmatprep.subr.bf16.mxu0 0
        %1504 = vmatpush2.bf16.msra.mxu0 %v1458
        %1505 = vmatprep.subr.bf16.mxu0 0
        %1506 = vmatpush2.bf16.msra.mxu0 %v1457
        %1507 = vmatprep.subr.bf16.mxu0 0
        %1508 = vmatpush2.bf16.msra.mxu0 %v1456
        %1509 = vmatprep.subr.bf16.mxu0 0
        %1510 = vmatpush2.bf16.msra.mxu0 %v1455
        %1511 = vmatprep.mubr.bf16.mxu0 %v1336
        %1512 = vmatmul.mubr.bf16.gmra.mxu0 %v1335
        %v1513 = vpop.f32.mrf.mxu0
        %v1514 = vadd.f32 0.0, %v1513
        %v1515 = vpop.f32.mrf.mxu0
        %v1516 = vpop.f32.mrf.mxu0
        %v1517 = vadd.f32 0.0, %v1516
        %v1518 = vpop.f32.mrf.mxu0
        %1519 = vmatprep.mubr.bf16.mxu0 %v1338
        %1520 = vmatmul.mubr.bf16.gmra.mxu0 %v1337
        %v1521 = vpop.f32.mrf.mxu0
        %v1522 = vadd.f32 0.0, %v1521
        %v1523 = vpop.f32.mrf.mxu0
        %v1524 = vpop.f32.mrf.mxu0
        %v1525 = vadd.f32 0.0, %v1524
        %v1526 = vpop.f32.mrf.mxu0
        %1527 = vmatprep.mubr.bf16.mxu0 %v1340
        %1528 = vmatmul.mubr.bf16.gmra.mxu0 %v1339
        %v1529 = vpop.f32.mrf.mxu0
        %v1530 = vadd.f32 0.0, %v1529
        %v1531 = vpop.f32.mrf.mxu0
        %v1532 = vpop.f32.mrf.mxu0
        %v1533 = vadd.f32 0.0, %v1532
        %v1534 = vpop.f32.mrf.mxu0
        %1535 = vmatprep.mubr.bf16.mxu0 %v1342
        %1536 = vmatmul.mubr.bf16.gmra.mxu0 %v1341
        %v1537 = vpop.f32.mrf.mxu0
        %v1538 = vadd.f32 0.0, %v1537
        %v1539 = vpop.f32.mrf.mxu0
        %v1540 = vpop.f32.mrf.mxu0
        %v1541 = vadd.f32 0.0, %v1540
        %v1542 = vpop.f32.mrf.mxu0
        %1543 = vmatprep.mubr.bf16.mxu0 %v1344
        %1544 = vmatmul.mubr.bf16.gmra.mxu0 %v1343
        %v1545 = vpop.f32.mrf.mxu0
        %v1546 = vadd.f32 0.0, %v1545
        %v1547 = vpop.f32.mrf.mxu0
        %v1548 = vpop.f32.mrf.mxu0
        %v1549 = vadd.f32 0.0, %v1548
        %v1550 = vpop.f32.mrf.mxu0
        %1551 = vmatprep.mubr.bf16.mxu0 %v1346
        %1552 = vmatmul.mubr.bf16.gmra.mxu0 %v1345
        %v1553 = vpop.f32.mrf.mxu0
        %v1554 = vadd.f32 0.0, %v1553
        %v1555 = vpop.f32.mrf.mxu0
        %v1556 = vpop.f32.mrf.mxu0
        %v1557 = vadd.f32 0.0, %v1556
        %v1558 = vpop.f32.mrf.mxu0
        %1559 = vmatprep.mubr.bf16.mxu0 %v1348
        %1560 = vmatmul.mubr.bf16.gmra.mxu0 %v1347
        %v1561 = vpop.f32.mrf.mxu0
        %v1562 = vadd.f32 0.0, %v1561
        %v1563 = vpop.f32.mrf.mxu0
        %v1564 = vpop.f32.mrf.mxu0
        %v1565 = vadd.f32 0.0, %v1564
        %v1566 = vpop.f32.mrf.mxu0
        %1567 = vmatprep.mubr.bf16.mxu0 %v1350
        %1568 = vmatmul.mubr.bf16.gmra.mxu0 %v1349
        %v1569 = vpop.f32.mrf.mxu0
        %v1570 = vadd.f32 0.0, %v1569
        %v1571 = vpop.f32.mrf.mxu0
        %v1572 = vpop.f32.mrf.mxu0
        %v1573 = vadd.f32 0.0, %v1572
        %v1574 = vpop.f32.mrf.mxu0
        %1575 = vdwg.mxu0
        %v1576 = vadd.f32 %v524, %v1514
        %v1577 = vadd.f32 %v525, %v1517
        %v1578 = vadd.f32 %v526, %v1522
        %v1579 = vadd.f32 %v527, %v1525
        %v1580 = vadd.f32 %v528, %v1530
        %v1581 = vadd.f32 %v529, %v1533
        %v1582 = vadd.f32 %v530, %v1538
        %v1583 = vadd.f32 %v531, %v1541
        %v1584 = vadd.f32 %v532, %v1546
        %v1585 = vadd.f32 %v533, %v1549
        %v1586 = vadd.f32 %v534, %v1554
        %v1587 = vadd.f32 %v535, %v1557
        %v1588 = vadd.f32 %v536, %v1562
        %v1589 = vadd.f32 %v537, %v1565
        %v1590 = vadd.f32 %v538, %v1570
        %v1591 = vadd.f32 %v539, %v1573
        %1592 = vst [vmem:[%s273] sm:$0xff] %v1576
        %1593 = vst [vmem:[%s273 + $0x8] sm:$0xff] %v1577
        %1594 = vst [vmem:[%s273 + $0x10] sm:$0xff] %v1578
        %1595 = vst [vmem:[%s273 + $0x18] sm:$0xff] %v1579
        %1596 = vst [vmem:[%s273 + $0x20] sm:$0xff] %v1580
        %1597 = vst [vmem:[%s273 + $0x28] sm:$0xff] %v1581
        %1598 = vst [vmem:[%s273 + $0x30] sm:$0xff] %v1582
        %1599 = vst [vmem:[%s273 + $0x38] sm:$0xff] %v1583
        %1600 = vst [vmem:[%s273 + $0x40] sm:$0xff] %v1584
        %1601 = vst [vmem:[%s273 + $0x48] sm:$0xff] %v1585
        %1602 = vst [vmem:[%s273 + $0x50] sm:$0xff] %v1586
        %1603 = vst [vmem:[%s273 + $0x58] sm:$0xff] %v1587
        %1604 = vst [vmem:[%s273 + $0x60] sm:$0xff] %v1588
        %1605 = vst [vmem:[%s273 + $0x68] sm:$0xff] %v1589
        %1606 = vst [vmem:[%s273 + $0x70] sm:$0xff] %v1590
        %1607 = vst [vmem:[%s273 + $0x78] sm:$0xff] %v1591
        %s1608 = sand.u32 %s146, 1
        %s1609 = scalar_lea.sflag [#allocation4], %s1608
        %s1610 = sand.u32 %s146, 1
        %s1611 = smul.addr %s1610, 128
        %s1612 = scalar_lea.vmem [#allocation7], %s1611
        // Predicated region
        $region49: #{gpt_block_pallas.1} parent=39 // pred_check
          %p1613 = pneg %p156
        $region50: #{gpt_block_pallas.1} parent=39 // pred_check_branch
          %1615 = sbr.rel (%p1613) target = $region52
        $region51: #{gpt_block_pallas.1} parent=39 // pred_region
          %s1616 = smul.u32 16, %s23
          %s1618 = ssub.s32 2048, 2048
          %1619 = vsyncadd %s1609, %s1618
          %s1620 = smul.addr %s1616, 128
          %s1621 = scalar_lea.hbm %s5, %s1620
          %s1622 = sshll.u32 %s1612, 4
          %s1623 = int_to_ptr.vmem [resolvable:$true] %s1622
          %1628 = dma.vmem_to_hbm [thread:$0]  %s1623, 2048, %s1621, %s1609, 128, 128, 8
        $region52: #{gpt_block_pallas.1} parent=39 // pred_fallthru
          _
      $region40: #{gpt_block_pallas.1} parent=5 // pred_fallthru
        _
      %p1629 = scmp.le.s32.totalorder 2, %s18
      // Predicated region
      $region53: #{gpt_block_pallas.1} parent=5 // pred_check
        %p1630 = pneg %p1629
      $region54: #{gpt_block_pallas.1} parent=5 // pred_check_branch
        %1632 = sbr.rel (%p1630) target = $region56
      $region55: #{gpt_block_pallas.1} parent=5 // pred_region
        %s1633 = ssub.s32 %s18, 2
        // Predicated region
        $region57: #{gpt_block_pallas.1} parent=55 // pred_check
          %p1634 = pneg %p162
        $region58: #{gpt_block_pallas.1} parent=55 // pred_check_branch
          %1636 = sbr.rel (%p1634) target = $region60
        $region59: #{gpt_block_pallas.1} parent=55 // pred_region
          %s1637 = sand.u32 %s147, 1
          %s1638 = scalar_lea.sflag [#allocation4], %s1637
          %s1639 = sand.u32 %s147, 1
          %s1640 = smul.addr %s1639, 128
          %s1641 = scalar_lea.vmem [#allocation7], %s1640
          %1642 = dma.done %s1638, 2048
        $region60: #{gpt_block_pallas.1} parent=55 // pred_fallthru
          _
      $region56: #{gpt_block_pallas.1} parent=5 // pred_fallthru
        _
    $region6: #{gpt_block_pallas.1} parent=1 // loop_footer
      %s22 = sadd.s32 1, %s18
    $region7: #{gpt_block_pallas.1} parent=1 // loop_footer_branch
      %17 = sbr.rel target = $region3
    $region8: #{gpt_block_pallas.1} parent=1 // loop_exit
      _
    %1643 = vsyncpa [#allocation3], 1
    %s1644 = scalar_lea.sflag [#allocation3], 1
    %1645 = vsyncpa %s1644, 1
    %1646 = vsyncpa [#allocation6], 1
    %1647 = vsyncpa [#allocation4], 1
    %s1648 = scalar_lea.sflag [#allocation4], 1
    %1649 = vsyncpa %s1648, 1

</llo_original>
